<compile_context>
chip_gen: v6e
topology: v6e:2x2x1
jax: 0.10.0
libtpu: 0.0.40
codegen_flags: <defaults>
</compile_context>

<pallas_src>
import functools
import math

import jax
import jax.numpy as jnp
from jax import lax
from jax.experimental import pallas as pl
from jax.experimental.pallas import tpu as pltpu

_LANE = 128


def _round_up(x, m):
    return (x + m - 1) // m * m


def _pad2(a, rows, cols):
    pr, pc = rows - a.shape[0], cols - a.shape[1]
    if pr == 0 and pc == 0:
        return a
    return jnp.pad(a, ((0, pr), (0, pc)))


def _choose_tiles(n, tm=None, tk=None):
    """Pick (tm, tk, n_pad).  Tiles are (8,128)-aligned; N is padded up to a
    common multiple so there is never a single-giant-block fallback."""
    n128 = _round_up(max(n, 1), _LANE)

    def _default():
        for t in (512, 256, 128):
            if n128 % t == 0 or n128 < t:
                return min(t, n128)
        return 128

    if tm is None:
        tm = _default()
    if tk is None:
        tk = _default()
    tm = _round_up(tm, 8)
    tk = _round_up(tk, _LANE)
    n_pad = _round_up(n, math.lcm(tm, tk))
    return tm, tk, n_pad


def _tile_sparsity(adj_pad, tm, tk):
    """Compressed per-row-tile list of nonzero adjacency column tiles.

    Returns (counts[ni], kidx[ni, max_k], max_k).  Entries past counts[i]
    repeat the last valid tile index, so consecutive grid steps keep the same
    block index and the pipeline issues no DMA for them; the kernel gates the
    MXU work with k < counts[i]."""
    n_pad = adj_pad.shape[0]
    ni, nk = n_pad // tm, n_pad // tk
    nz = jnp.abs(adj_pad).reshape(ni, tm, nk, tk).sum(axis=(1, 3)) > 0.0
    counts = nz.sum(axis=1).astype(jnp.int32)                        # (ni,)
    col = jnp.arange(nk, dtype=jnp.int32)[None, :]
    order = jnp.argsort(jnp.where(nz, col, col + nk), axis=1).astype(jnp.int32)
    last = jnp.take_along_axis(order, jnp.maximum(counts - 1, 0)[:, None], axis=1)
    kidx = jnp.where(col < counts[:, None], order, last)
    max_k = max(int(jnp.max(counts)), 1)
    return counts, kidx[:, :max_k], max_k


def _hash_keep(rows_u32, cols_u32, seed_u32, salt):
    """Counter-based hash -> Bernoulli(0.5) keep mask, deterministic in
    (global row, column, seed, salt).  The exact same jnp code runs inside the
    Pallas kernel and in the pure-JAX reference."""
    x = rows_u32 * jnp.uint32(0x9E3779B1)
    x = x ^ (cols_u32 * jnp.uint32(0x85EBCA77))
    x = x ^ (seed_u32 + jnp.uint32(salt & 0xFFFFFFFF) * jnp.uint32(0xC2B2AE3D))
    x = x ^ (x >> 16)
    x = x * jnp.uint32(0x7FEB352D)
    x = x ^ (x >> 15)
    x = x * jnp.uint32(0x846CA68B)
    x = x ^ (x >> 16)
    return (x & jnp.uint32(1)) == jnp.uint32(1)


# ---------------------------------------------------------------------------
# Pallas kernels
# ---------------------------------------------------------------------------

def _gcn_layer_kernel(seed_ref, cnt_ref, kidx_ref, adj_ref, *refs,
                      num_rhs, num_wts, segments, tm):
    """acc_b += adj_tile @ rhs_b_tile over the (sparse-compressed) k axis;
    finalize: optional resident-W^T matmul, ReLU, hash dropout, lane-dense store."""
    rhs_refs = refs[:num_rhs]
    wt_refs = refs[num_rhs:num_rhs + num_wts]
    out_refs = refs[num_rhs + num_wts:num_rhs + num_wts + num_rhs]
    acc_refs = refs[num_rhs + num_wts + num_rhs:]
    del kidx_ref  # consumed by the index_maps only

    # Grid queries are read ONLY at the top level of the kernel body (never
    # inside pl.when closures) so they are always substituted correctly.
    i = pl.program_id(0)
    k = pl.program_id(1)
    num_k = pl.num_programs(1)
    n_valid = cnt_ref[i]
    row_base = (i * tm).astype(jnp.uint32)
    seed = seed_ref[0].astype(jnp.uint32)

    @pl.when(k == 0)
    def _init():
        for acc in acc_refs:
            acc[...] = jnp.zeros_like(acc)

    @pl.when(k < n_valid)          # skip MXU work on all-zero adjacency tiles
    def _accumulate():
        a = adj_ref[...]
        for b in range(num_rhs):
            acc_refs[b][...] += jnp.dot(a, rhs_refs[b][...],
                                        preferred_element_type=jnp.float32)

    @pl.when(k == num_k - 1)
    def _finalize():
        for b, seg in enumerate(segments):
            h = acc_refs[b][...]
            if seg["wt"] is not None:                         # VMEM-resident W^T
                h = jnp.dot(h, wt_refs[seg["wt"]][...],
                            preferred_element_type=jnp.float32)
            if seg["relu"]:
                h = jnp.maximum(h, 0.0)
            if seg["dropout"]:
                rows = (lax.broadcasted_iota(jnp.int32, h.shape, 0)
                        .astype(jnp.uint32) + row_base)
                cols = lax.broadcasted_iota(jnp.int32, h.shape, 1).astype(jnp.uint32)
                keep = _hash_keep(rows, cols, seed, seg["salt"])
                h = jnp.where(keep, h * 2.0, 0.0)   # nn.Dropout(p=0.5): scale 2x
            out_refs[b][...] = h.astype(out_refs[b].dtype)


def _linear_kernel(x_ref, wt_ref, out_ref):
    out_ref[...] = jnp.dot(x_ref[...], wt_ref[...],
                           preferred_element_type=jnp.float32).astype(out_ref.dtype)


def _linear_rows(x, wt, *, tm, out_dtype):
    """out = x @ wt, row-tiled; the (small, lane-padded) wt stays VMEM-resident."""
    n, d_in = x.shape
    d_out = wt.shape[1]
    return pl.pallas_call(
        _linear_kernel,
        out_shape=jax.ShapeDtypeStruct((n, d_out), out_dtype),
        grid=(n // tm,),
        in_specs=[pl.BlockSpec((tm, d_in), lambda i: (i, 0)),
                  pl.BlockSpec((d_in, d_out), lambda i: (0, 0))],
        out_specs=pl.BlockSpec((tm, d_out), lambda i: (i, 0)),
        compiler_params=pltpu.CompilerParams(dimension_semantics=("parallel",)),
    )(x, wt)


# ---------------------------------------------------------------------------
# One fused GCN layer (adj streamed once for all branches, zero tiles skipped)
# ---------------------------------------------------------------------------

def _fused_gcn_layer(adj_pad, branches, counts, kidx, max_k, dropout_seed, *,
                     tm, tk, compute_dtype):
    """branches: list of {x:[N_pad, d_in_pad], wt:[d_in_pad, d_out_pad] (f32),
    relu, dropout, salt}.  Returns one lane-padded [N_pad, d_out_pad] array per
    branch in compute_dtype.  adj HBM traffic is shared across branches."""
    n_pad = adj_pad.shape[0]
    num_i = n_pad // tm

    rhs_list, rhs_widths = [], []
    wts, wt_keys = [], []
    segments, out_widths = [], []
    for br in branches:
        wt_pad = br["wt"]                            # [d_in_pad, d_out_pad] f32
        d_in_pad, d_out_pad = wt_pad.shape
        if d_out_pad < d_in_pad:
            # Reassociate: adj @ (x @ W^T) -> stream/multiply the narrower side.
            xw = _linear_rows(br["x"].astype(compute_dtype),
                              wt_pad.astype(compute_dtype),
                              tm=tm, out_dtype=compute_dtype)
            rhs_list.append(xw)
            rhs_widths.append(d_out_pad)
            seg = dict(wt=None, relu=br["relu"], dropout=br["dropout"],
                       salt=br["salt"])
        else:
            rhs_list.append(br["x"].astype(compute_dtype))
            rhs_widths.append(d_in_pad)
            key = id(br["wt"])          # dedupe shared weights across branches
            if key in wt_keys:
                wt_idx = wt_keys.index(key)
            else:
                wts.append(wt_pad)
                wt_keys.append(key)
                wt_idx = len(wts) - 1
            seg = dict(wt=wt_idx, relu=br["relu"], dropout=br["dropout"],
                       salt=br["salt"])
        segments.append(seg)
        out_widths.append(d_out_pad)

    seed_arr = jnp.asarray([dropout_seed], dtype=jnp.int32)
    itemsize = jnp.dtype(compute_dtype).itemsize
    nnz_tiles = int(jnp.sum(counts))
    d_rhs_total = sum(rhs_widths)

    # Roofline bookkeeping (includes the rhs re-stream: once per nonzero tile).
    flops = 2 * nnz_tiles * tm * tk * d_rhs_total
    bytes_accessed = nnz_tiles * tm * tk * itemsize              # adj stream
    bytes_accessed += nnz_tiles * tk * d_rhs_total * itemsize    # rhs re-stream
    bytes_accessed += n_pad * sum(out_widths) * itemsize         # outputs
    bytes_accessed += sum(int(w.size) * 4 for w in wts)          # resident W^T
    for seg in segments:
        if seg["wt"] is not None:
            w = wts[seg["wt"]]
            flops += 2 * n_pad * w.shape[0] * w.shape[1]

    # Explicit scoped-VMEM limit with headroom (stays under v7x's 64 MiB).
    vmem_need = (2 * tm * tk * itemsize
                 + sum(2 * tk * w * itemsize for w in rhs_widths)
                 + sum(int(w.size) * 4 for w in wts)
                 + sum(2 * tm * w * itemsize for w in out_widths)
                 + sum(tm * w * 4 for w in rhs_widths))
    vmem_limit = int(min(max(2 * vmem_need, 16 * 1024 * 1024), 48 * 1024 * 1024))

    def _adj_map(i, k, sd, cnt, kid):
        return (i, kid[i, k])

    def _rhs_map(i, k, sd, cnt, kid):
        return (kid[i, k], 0)

    def _res_map(i, k, sd, cnt, kid):
        return (0, 0)

    def _out_map(i, k, sd, cnt, kid):
        return (i, 0)

    kernel = functools.partial(_gcn_layer_kernel, num_rhs=len(rhs_list),
                               num_wts=len(wts), segments=segments, tm=tm)

    outs = pl.pallas_call(
        kernel,
        out_shape=tuple(jax.ShapeDtypeStruct((n_pad, w), compute_dtype)
                        for w in out_widths),
        grid_spec=pltpu.PrefetchScalarGridSpec(
            num_scalar_prefetch=3,       # dropout seed, tile counts, tile idx
            grid=(num_i, max_k),
            in_specs=([pl.BlockSpec((tm, tk), _adj_map)]
                      + [pl.BlockSpec((tk, w), _rhs_map) for w in rhs_widths]
                      + [pl.BlockSpec(w.shape, _res_map) for w in wts]),
            out_specs=tuple(pl.BlockSpec((tm, w), _out_map) for w in out_widths),
            scratch_shapes=[pltpu.VMEM((tm, w), jnp.float32) for w in rhs_widths],
        ),
        compiler_params=pltpu.CompilerParams(
            dimension_semantics=("parallel", "arbitrary"),
            vmem_limit_bytes=vmem_limit),
        cost_estimate=pl.CostEstimate(flops=int(flops), transcendentals=0,
                                      bytes_accessed=int(bytes_accessed)),
    )(seed_arr, counts, kidx, adj_pad.astype(compute_dtype), *rhs_list, *wts)

    if not isinstance(outs, (list, tuple)):
        outs = (outs,)
    return list(outs)


# ---------------------------------------------------------------------------
# Full forward (mirrors net_gcn_multitask.forward)
# ---------------------------------------------------------------------------

def net_gcn_multitask_forward(params, x, adj, *, val_test=False, dropout_seed=0,
                              use_bf16=True, tm=None, tk=None):
    """params = {"net_layer": [W (torch layout d_out x d_in) ...],
                 "ss_classifier": W_ss (ss_dim x embedding_dim[-2])}.
    Returns (x, x_ss); x_ss is the untouched input when val_test=True."""
    weights = params["net_layer"]
    w_ss = params["ss_classifier"]
    layer_num = len(weights)

    x = jnp.asarray(x)
    adj_f32 = jnp.asarray(adj, jnp.float32)
    n, d0 = x.shape
    compute_dtype = jnp.bfloat16 if use_bf16 else jnp.float32

    tm, tk, n_pad = _choose_tiles(n, tm, tk)

    adj_pad = _pad2(adj_f32, n_pad, n_pad)
    counts, kidx, max_k = _tile_sparsity(adj_pad, tm, tk)   # block-sparse skip
    adj_pad = adj_pad.astype(compute_dtype)                 # cast once, reused per layer

    def _prep(w):   # torch (d_out, d_in) -> lane-padded (d_in_pad, d_out_pad) f32
        w = jnp.asarray(w, jnp.float32)
        d_out, d_in = w.shape
        return _pad2(w.T, _round_up(d_in, _LANE), _round_up(d_out, _LANE))

    wts_t = [_prep(w) for w in weights]
    w_ss_t = _prep(w_ss)

    # Lane/row padded feature slab, carried across layers in compute_dtype.
    x_pad = _pad2(jnp.asarray(x, jnp.float32), n_pad,
                  _round_up(d0, _LANE)).astype(compute_dtype)
    x_main, x_ss = x_pad, x_pad

    for ln in range(layer_num):
        is_last = ln == layer_num - 1
        branches = [dict(x=x_main, wt=wts_t[ln], relu=not is_last,
                         dropout=(not is_last) and (not val_test), salt=2 * ln)]
        if not val_test:
            if is_last:
                # SS branch last step: adj @ x_ss, then ss_classifier.
                branches.append(dict(x=x_ss, wt=w_ss_t, relu=False,
                                     dropout=False, salt=2 * ln + 1))
            else:
                branches.append(dict(x=x_ss, wt=wts_t[ln], relu=True,
                                     dropout=True, salt=2 * ln + 1))
        outs = _fused_gcn_layer(adj_pad, branches, counts, kidx, max_k,
                                dropout_seed, tm=tm, tk=tk,
                                compute_dtype=compute_dtype)
        x_main = outs[0]
        if not val_test:
            x_ss = outs[1]

    d_last = weights[-1].shape[0]
    out_main = x_main[:n, :d_last].astype(jnp.float32)
    if val_test:
        out_ss = x                      # torch returns the untouched input
    else:
        out_ss = x_ss[:n, :w_ss.shape[0]].astype(jnp.float32)
    return out_main, out_ss


# ---------------------------------------------------------------------------
# Pure-JAX reference (same hash-dropout -> exact mask comparison in training)
# ---------------------------------------------------------------------------

def _ref_forward(params, x, adj, *, val_test, dropout_seed):
    weights = [jnp.asarray(w, jnp.float32) for w in params["net_layer"]]
    w_ss = jnp.asarray(params["ss_classifier"], jnp.float32)
    layer_num = len(weights)
    adj = jnp.asarray(adj, jnp.float32)
    n = adj.shape[0]
    rows = jnp.arange(n, dtype=jnp.uint32)[:, None]
    seed = jnp.uint32(dropout_seed)

    def dropout(h, salt):
        cols = jnp.arange(h.shape[1], dtype=jnp.uint32)[None, :]
        keep = _hash_keep(rows, cols, seed, salt)
        return jnp.where(keep, h * 2.0, 0.0)

    h = jnp.asarray(x, jnp.float32)
    for ln in range(layer_num):
        h = adj @ h
        h = h @ weights[ln].T
        if ln == layer_num - 1:
            break
        h = jnp.maximum(h, 0.0)
        if not val_test:
            h = dropout(h, 2 * ln)

    if val_test:
        return h, jnp.asarray(x)

    hs = jnp.asarray(x, jnp.float32)
    for ln in range(layer_num):
        hs = adj @ hs
        if ln == layer_num - 1:
            break
        hs = hs @ weights[ln].T
        hs = jnp.maximum(hs, 0.0)
        hs = dropout(hs, 2 * ln + 1)
    hs = hs @ w_ss.T
    return h, hs


if __name__ == "__main__":
    jax.config.update("jax_default_matmul_precision", "highest")

    key = jax.random.PRNGKey(0)
    n_nodes = 300                        # deliberately NOT a multiple of 128
    embedding_dim = [160, 96, 8]         # layer 0 exercises the reassociation path
    ss_dim = 6

    k_adj, k_x, k_w0, k_w1, k_wss, k_bd = jax.random.split(key, 6)

    def _norm_adj(a):
        a = jnp.minimum(jnp.maximum(a, a.T)
                        + jnp.eye(a.shape[0], dtype=jnp.float32), 1.0)
        d = 1.0 / jnp.sqrt(jnp.sum(a, axis=1))
        return a * d[:, None] * d[None, :]

    adj = _norm_adj((jax.random.uniform(k_adj, (n_nodes, n_nodes)) > 0.94)
                    .astype(jnp.float32))
    x = jax.random.normal(k_x, (n_nodes, embedding_dim[0]), dtype=jnp.float32)

    def init_linear(k, out_dim, in_dim):
        bound = 1.0 / jnp.sqrt(in_dim)
        return jax.random.uniform(k, (out_dim, in_dim), minval=-bound,
                                  maxval=bound, dtype=jnp.float32)

    params = {
        "net_layer": [init_linear(k_w0, embedding_dim[1], embedding_dim[0]),
                      init_linear(k_w1, embedding_dim[2], embedding_dim[1])],
        "ss_classifier": init_linear(k_wss, ss_dim, embedding_dim[-2]),
    }

    # 1) training mode, f32 operands, explicit 128x128 tiles (multi-tile grid on
    #    padded N=384): exact hash-dropout comparison against the reference.
    x_tr, x_ss_tr = net_gcn_multitask_forward(params, x, adj, val_test=False,
                                              dropout_seed=1234, use_bf16=False,
                                              tm=128, tk=128)
    jax.block_until_ready((x_tr, x_ss_tr))
    assert x_tr.shape == (n_nodes, embedding_dim[-1])
    assert x_ss_tr.shape == (n_nodes, ss_dim)
    x_tr_ref, x_ss_tr_ref = _ref_forward(params, x, adj, val_test=False,
                                         dropout_seed=1234)
    assert jnp.allclose(x_tr, x_tr_ref, atol=3e-3, rtol=3e-3), "train main mismatch"
    assert jnp.allclose(x_ss_tr, x_ss_tr_ref, atol=3e-3, rtol=3e-3), "train ss mismatch"

    # 2) eval mode (val_test=True), auto tiles, f32.
    x_ev, x_ss_ev = net_gcn_multitask_forward(params, x, adj, val_test=True,
                                              use_bf16=False)
    jax.block_until_ready((x_ev, x_ss_ev))
    x_ev_ref, _ = _ref_forward(params, x, adj, val_test=True, dropout_seed=0)
    assert jnp.allclose(x_ev, x_ev_ref, atol=3e-3, rtol=3e-3), "eval main mismatch"
    assert jnp.array_equal(x_ss_ev, x), "eval ss should be the untouched input"

    # 3) default bf16 MXU-operand / bf16-slab path (training): loose tolerance.
    x_bf, x_ss_bf = net_gcn_multitask_forward(params, x, adj, val_test=False,
                                              dropout_seed=1234)
    jax.block_until_ready((x_bf, x_ss_bf))
    assert jnp.allclose(x_bf, x_tr_ref, atol=0.1, rtol=0.05), "bf16 main mismatch"
    assert jnp.allclose(x_ss_bf, x_ss_tr_ref, atol=0.1, rtol=0.05), "bf16 ss mismatch"

    # 4) block-diagonal adjacency: exercises the block-sparse tile skip
    #    (per-row-tile nonzero count = 1 while the k grid would otherwise be 3).
    n_bd = 384
    a_bd = jnp.zeros((n_bd, n_bd), jnp.float32)
    for t, kk in enumerate(jax.random.split(k_bd, 3)):
        blk = (jax.random.uniform(kk, (128, 128)) > 0.7).astype(jnp.float32)
        a_bd = a_bd.at[t * 128:(t + 1) * 128, t * 128:(t + 1) * 128].set(blk)
    adj_bd = _norm_adj(a_bd)
    x_bd = jax.random.normal(jax.random.PRNGKey(7), (n_bd, embedding_dim[0]),
                             dtype=jnp.float32)
    y_bd, _ = net_gcn_multitask_forward(params, x_bd, adj_bd, val_test=True,
                                        use_bf16=False, tm=128, tk=128)
    jax.block_until_ready(y_bd)
    y_bd_ref, _ = _ref_forward(params, x_bd, adj_bd, val_test=True, dropout_seed=0)
    assert jnp.allclose(y_bd, y_bd_ref, atol=3e-3, rtol=3e-3), "block-sparse mismatch"

    print("KERNEL_OK")
</pallas_src>

<mosaic_0001>
module attributes {stable_mosaic.version = 11 : i64} {
  func.func @_linear_kernel(%arg0: i32, %arg1: memref<128x256xf32, #tpu.memory_space<vmem>>, %arg2: memref<256x128xf32, #tpu.memory_space<vmem>>, %arg3: memref<128x128xf32, #tpu.memory_space<vmem>>) attributes {dimension_semantics = [#tpu.dimension_semantics<parallel>], iteration_bounds = array<i64: 3>, scalar_prefetch = 0 : i64, scratch_operands = 0 : i64, tpu.core_type = #tpu.core_type<tc>, window_params = [{transform_indices = @transform_0, window_bounds = array<i64: 128, 256>}, {pipeline_mode = #tpu.pipeline_mode<synchronous>, transform_indices = @transform_1, window_bounds = array<i64: 256, 128>}, {transform_indices = @transform_2, window_bounds = array<i64: 128, 128>}]} {
    %c0 = arith.constant 0 : index
    %c0_0 = arith.constant 0 : index
    %0 = vector.load %arg1[%c0, %c0_0] : memref<128x256xf32, #tpu.memory_space<vmem>>, vector<128x256xf32>
    %c0_1 = arith.constant 0 : index
    %c0_2 = arith.constant 0 : index
    %1 = vector.load %arg2[%c0_1, %c0_2] : memref<256x128xf32, #tpu.memory_space<vmem>>, vector<256x128xf32>
    %cst = arith.constant dense<0.000000e+00> : vector<128x128xf32>
    %2 = tpu.matmul %0, %1, %cst {dimension_numbers = #tpu.dot_dimension_numbers<[1], [0], [0], [1], [0, 0, 1, 1], [], []>, precision = #tpu.contract_precision<fp32>} : vector<128x256xf32>, vector<256x128xf32>, vector<128x128xf32> -> vector<128x128xf32>
    %c0_3 = arith.constant 0 : index
    %c0_4 = arith.constant 0 : index
    %3 = vector.load %arg3[%c0_3, %c0_4] : memref<128x128xf32, #tpu.memory_space<vmem>>, vector<128x128xf32>
    tpu.vector_store %arg3[%c0_3, %c0_4], %2 {strides = array<i32>} : memref<128x128xf32, #tpu.memory_space<vmem>>, vector<128x128xf32>,
    return
  }
  func.func @transform_0(%arg0: i32) -> (i32, i32) {
    %c0_i32 = arith.constant 0 : i32
    %c0_i32_0 = arith.constant 0 : i32
    return %arg0, %c0_i32 : i32, i32
  }
  func.func @transform_1(%arg0: i32) -> (i32, i32) {
    %c0_i32 = arith.constant 0 : i32
    %c0_i32_0 = arith.constant 0 : i32
    %c0_i32_1 = arith.constant 0 : i32
    return %c0_i32, %c0_i32_0 : i32, i32
  }
  func.func @transform_2(%arg0: i32) -> (i32, i32) {
    %c0_i32 = arith.constant 0 : i32
    %c0_i32_0 = arith.constant 0 : i32
    return %arg0, %c0_i32 : i32, i32
  }
}

</mosaic_0001>

<llo_original>
// kernel: tpu_custom_call.1
$region0: #{tpu_custom_call.1}
  #allocation0 [shape = 'u32[]', space=smem, size = 0x4, offset = 0x4, fixed_abs, tag = 'smem constant byte address 0x4 - core index']
  #allocation1 [shape = 'u32[144,128]{1,0:T(1,128)}', space=vmem, size = 0x12000, scoped, tag = 'internal scratch']
  %s0 = inlined_call_operand.hbm [shape: f32[384,256], index: 0, kind: input, shape index: {}]
  %s1 = inlined_call_operand.hbm [shape: f32[256,128], index: 1, kind: input, shape index: {}]
  %s2 = inlined_call_operand.hbm [shape: f32[384,128], index: 2, kind: output, shape index: {}]
  %s3 = sld [smem:[#allocation0]]
  $region49: #{tpu_custom_call.1} parent=0
    _
  %s5 = ssub.s32 1, %s3
  %s6 = scalar_select 0, %s5, %s3
  $region1: #{tpu_custom_call.1} parent=0
    #allocation2 [shape = 'u8[262144]{0}', space=vmem, size = 0x40000, scoped, tag = 'input window, operand 0']
    #allocation3 [shape = 's32[2]{0}', space=sflag, size = 0x8, scoped, tag = 'scoped memory for tpu_custom_call.1']
    #allocation4 [shape = 's32[2]{0}', space=sflag, size = 0x8, scoped, tag = 'scoped memory for tpu_custom_call.1']
    #allocation5 [shape = 'u8[131072]{0}', space=vmem, size = 0x20000, scoped, tag = 'input window, operand 1, single buffered']
    #allocation6 [shape = 's32[1]{0}', space=sflag, size = 0x4, scoped, tag = 'scoped memory for tpu_custom_call.1']
    #allocation7 [shape = 'u8[131072]{0}', space=vmem, size = 0x20000, scoped, tag = 'output window, operand 0']
    %7 = vsyncpa [#allocation3], 0
    %s8 = scalar_lea.sflag [#allocation3], 1
    %9 = vsyncpa %s8, 0
    %10 = vsyncpa [#allocation6], 0
    %11 = vsyncpa [#allocation4], 0
    %s12 = scalar_lea.sflag [#allocation4], 1
    %13 = vsyncpa %s12, 0
    loop: start=0, step=1, limit=5
    $region2: #{tpu_custom_call.1} parent=1 // loop_pre_header
      _
    $region3: #{tpu_custom_call.1} parent=1 // loop_header
      %s15 = sphi 0, %s19
      %p16 = scmp.ge.s32.totalorder %s15, 5
      %s25 = sphi 0, %s27
      %s28 = sphi 0, %s25
      %s29 = sphi 0, %s28
      %s45 = sphi 0, %s29
      %s49 = sphi 0, %s49
      %s51 = sphi 0, %s49
      %s52 = sphi 0, %s51
      %s66 = sphi 0, %s52
      %s72 = sphi 0, %s74
      %s75 = sphi 0, %s72
      %s76 = sphi 0, %s75
      %s92 = sphi 0, %s76
    $region4: #{tpu_custom_call.1} parent=1 // loop_header_branch
      %18 = sbr.rel (%p16) target = $region8
    $region5: #{tpu_custom_call.1} parent=1 // loop_body
      %s20 = ssub.s32 %s15, 1
      %s21 = ssub.s32 %s15, 2
      %s22 = sadd.s32 %s15, 1
      %s23 = ssub.s32 %s15, %s22
      %p24 = scmp.eq.s32.totalorder %s23, 0
      %s26 = sadd.s32 %s25, 1
      %s27 = scalar_select %p24, %s25, %s26
      %p30 = pneg %p24
      %p31 = scmp.eq.s32.totalorder %s15, 2
      %p32 = por %p30, %p31
      %p33 = scmp.ne.s32.totalorder %s25, %s28
      %p34 = scmp.eq.s32.totalorder %s15, 0
      %p35 = por %p33, %p34
      %p36 = scmp.ne.s32.totalorder %s25, %s28
      %p37 = scmp.eq.s32.totalorder %s20, 2
      %p38 = por %p36, %p37
      %p39 = scmp.ne.s32.totalorder %s28, %s29
      %p40 = scmp.eq.s32.totalorder %s20, 0
      %p41 = por %p39, %p40
      %p42 = scmp.ne.s32.totalorder %s28, %s29
      %p43 = scmp.eq.s32.totalorder %s21, 2
      %p44 = por %p42, %p43
      %p46 = scmp.ne.s32.totalorder %s29, %s45
      %p47 = scmp.eq.s32.totalorder %s21, 0
      %p48 = por %p46, %p47
      %s50 = sadd.s32 %s49, 1
      %p53 = scmp.eq.s32.totalorder %s15, 2
      %p54 = scmp.ne.s32.totalorder %s49, %s51
      %p55 = scmp.eq.s32.totalorder %s15, 0
      %p56 = por %p54, %p55
      %p57 = scmp.ne.s32.totalorder %s49, %s51
      %p58 = scmp.eq.s32.totalorder %s20, 2
      %p59 = por %p57, %p58
      %p60 = scmp.ne.s32.totalorder %s51, %s52
      %p61 = scmp.eq.s32.totalorder %s20, 0
      %p62 = por %p60, %p61
      %p63 = scmp.ne.s32.totalorder %s51, %s52
      %p64 = scmp.eq.s32.totalorder %s21, 2
      %p65 = por %p63, %p64
      %p67 = scmp.ne.s32.totalorder %s52, %s66
      %p68 = scmp.eq.s32.totalorder %s21, 0
      %p69 = por %p67, %p68
      %s70 = ssub.s32 %s15, %s22
      %p71 = scmp.eq.s32.totalorder %s70, 0
      %s73 = sadd.s32 %s72, 1
      %s74 = scalar_select %p71, %s72, %s73
      %p77 = pneg %p71
      %p78 = scmp.eq.s32.totalorder %s15, 2
      %p79 = por %p77, %p78
      %p80 = scmp.ne.s32.totalorder %s72, %s75
      %p81 = scmp.eq.s32.totalorder %s15, 0
      %p82 = por %p80, %p81
      %p83 = scmp.ne.s32.totalorder %s72, %s75
      %p84 = scmp.eq.s32.totalorder %s20, 2
      %p85 = por %p83, %p84
      %p86 = scmp.ne.s32.totalorder %s75, %s76
      %p87 = scmp.eq.s32.totalorder %s20, 0
      %p88 = por %p86, %p87
      %p89 = scmp.ne.s32.totalorder %s75, %s76
      %p90 = scmp.eq.s32.totalorder %s21, 2
      %p91 = por %p89, %p90
      %p93 = scmp.ne.s32.totalorder %s76, %s92
      %p94 = scmp.eq.s32.totalorder %s21, 0
      %p95 = por %p93, %p94
      %p96 = scmp.le.s32.totalorder 1, %s15
      %p97 = scmp.lt.s32.totalorder %s15, 4
      %p98 = pnand %p96, %p97
      %p99 = pneg %p98
      // Predicated region
      $region9: #{tpu_custom_call.1} parent=5 // pred_check
        _
      $region10: #{tpu_custom_call.1} parent=5 // pred_check_branch
        %101 = sbr.rel (%p98) target = $region12
      $region11: #{tpu_custom_call.1} parent=5 // pred_region
        %s102 = ssub.s32 %s15, 1
        // Predicated region
        $region13: #{tpu_custom_call.1} parent=11 // pred_check
          %p103 = pneg %p62
        $region14: #{tpu_custom_call.1} parent=11 // pred_check_branch
          %105 = sbr.rel (%p103) target = $region16
        $region15: #{tpu_custom_call.1} parent=11 // pred_region
          %s107 = ssub.s32 4096, 4096
          %108 = vsyncadd [#allocation6], %s107
          %s109 = sshll.u32 [#allocation5], 4
          %s110 = int_to_ptr.vmem [resolvable:$true] %s109
          %115 = dma.hbm_to_vmem [thread:$0]  %s1, 4096, %s110, [#allocation6], 128, 128, 8
        $region16: #{tpu_custom_call.1} parent=11 // pred_fallthru
          _
      $region12: #{tpu_custom_call.1} parent=5 // pred_fallthru
        _
      %p116 = scmp.lt.s32.totalorder %s15, 3
      // Predicated region
      $region17: #{tpu_custom_call.1} parent=5 // pred_check
        %p117 = pneg %p116
      $region18: #{tpu_custom_call.1} parent=5 // pred_check_branch
        %119 = sbr.rel (%p117) target = $region20
      $region19: #{tpu_custom_call.1} parent=5 // pred_region
        // Predicated region
        $region21: #{tpu_custom_call.1} parent=19 // pred_check
          %p120 = pneg %p35
        $region22: #{tpu_custom_call.1} parent=19 // pred_check_branch
          %122 = sbr.rel (%p120) target = $region24
        $region23: #{tpu_custom_call.1} parent=19 // pred_region
          %s123 = sand.u32 %s25, 1
          %s124 = scalar_lea.sflag [#allocation3], %s123
          %s125 = sand.u32 %s25, 1
          %s126 = smul.addr %s125, 256
          %s127 = scalar_lea.vmem [#allocation2], %s126
          %s128 = smul.u32 16, %s15
          %s130 = ssub.s32 4096, 4096
          %131 = vsyncadd %s124, %s130
          %s132 = smul.addr %s128, 2
          %s133 = smul.addr %s132, 128
          %s134 = scalar_lea.hbm %s0, %s133
          %s135 = sshll.u32 %s127, 4
          %s136 = int_to_ptr.vmem [resolvable:$true] %s135
          %141 = dma.hbm_to_vmem [thread:$0]  %s134, 4096, %s136, %s124, 256, 256, 16
        $region24: #{tpu_custom_call.1} parent=19 // pred_fallthru
          _
      $region20: #{tpu_custom_call.1} parent=5 // pred_fallthru
        _
      %p142 = scmp.le.s32.totalorder 1, %s15
      %p143 = scmp.lt.s32.totalorder %s15, 4
      %p144 = pnand %p142, %p143
      %p145 = pneg %p144
      // Predicated region
      $region25: #{tpu_custom_call.1} parent=5 // pred_check
        _
      $region26: #{tpu_custom_call.1} parent=5 // pred_check_branch
        %147 = sbr.rel (%p144) target = $region28
      $region27: #{tpu_custom_call.1} parent=5 // pred_region
        %s148 = ssub.s32 %s15, 1
        %s149 = sand.u32 %s28, 1
        %s150 = scalar_lea.sflag [#allocation3], %s149
        %s151 = sand.u32 %s28, 1
        %s152 = smul.addr %s151, 256
        %s153 = scalar_lea.vmem [#allocation2], %s152
        // Predicated region
        $region29: #{tpu_custom_call.1} parent=27 // pred_check
          %p154 = pneg %p41
        $region30: #{tpu_custom_call.1} parent=27 // pred_check_branch
          %156 = sbr.rel (%p154) target = $region32
        $region31: #{tpu_custom_call.1} parent=27 // pred_region
          %157 = dma.done %s150, 4096
        $region32: #{tpu_custom_call.1} parent=27 // pred_fallthru
          _
        // Predicated region
        $region33: #{tpu_custom_call.1} parent=27 // pred_check
          %p158 = pneg %p62
        $region34: #{tpu_custom_call.1} parent=27 // pred_check_branch
          %160 = sbr.rel (%p158) target = $region36
        $region35: #{tpu_custom_call.1} parent=27 // pred_region
          %161 = dma.done [#allocation6], 4096
        $region36: #{tpu_custom_call.1} parent=27 // pred_fallthru
          _
        %s162 = sand.u32 %s28, 1
        %s163 = scalar_lea.sflag [#allocation3], %s162
        %s164 = sand.u32 %s28, 1
        %s165 = smul.addr %s164, 256
        %s166 = scalar_lea.vmem [#allocation2], %s165
        %p167 = pneg %p41
        %p168 = pneg %p38
        %p169 = pneg %p62
        %p170 = pneg %p59
        %p171 = pneg %p88
        %p172 = pneg %p85
        %s173 = sand.u32 %s75, 1
        %s174 = scalar_lea.sflag [#allocation4], %s173
        %s175 = sand.u32 %s75, 1
        %s176 = smul.addr %s175, 128
        %s177 = scalar_lea.vmem [#allocation7], %s176
        %s178 = smul.u32 16, %s20
        %s179 = smul.u32 16, %s20
        %v180 = vld [vmem:[%s153] sm:$0xff]
        %v181 = vld [vmem:[%s153 + $0x8] sm:$0xff]
        %v182 = vld [vmem:[%s153 + $0x10] sm:$0xff]
        %v183 = vld [vmem:[%s153 + $0x18] sm:$0xff]
        %v184 = vld [vmem:[%s153 + $0x20] sm:$0xff]
        %v185 = vld [vmem:[%s153 + $0x28] sm:$0xff]
        %v186 = vld [vmem:[%s153 + $0x30] sm:$0xff]
        %v187 = vld [vmem:[%s153 + $0x38] sm:$0xff]
        %v188 = vld [vmem:[%s153 + $0x40] sm:$0xff]
        %v189 = vld [vmem:[%s153 + $0x48] sm:$0xff]
        %v190 = vld [vmem:[%s153 + $0x50] sm:$0xff]
        %v191 = vld [vmem:[%s153 + $0x58] sm:$0xff]
        %v192 = vld [vmem:[%s153 + $0x60] sm:$0xff]
        %v193 = vld [vmem:[%s153 + $0x68] sm:$0xff]
        %v194 = vld [vmem:[%s153 + $0x70] sm:$0xff]
        %v195 = vld [vmem:[%s153 + $0x78] sm:$0xff]
        %v196 = vld [vmem:[%s153 + $0x80] sm:$0xff]
        %v197 = vld [vmem:[%s153 + $0x88] sm:$0xff]
        %v198 = vld [vmem:[%s153 + $0x90] sm:$0xff]
        %v199 = vld [vmem:[%s153 + $0x98] sm:$0xff]
        %v200 = vld [vmem:[%s153 + $0xa0] sm:$0xff]
        %v201 = vld [vmem:[%s153 + $0xa8] sm:$0xff]
        %v202 = vld [vmem:[%s153 + $0xb0] sm:$0xff]
        %v203 = vld [vmem:[%s153 + $0xb8] sm:$0xff]
        %v204 = vld [vmem:[%s153 + $0xc0] sm:$0xff]
        %v205 = vld [vmem:[%s153 + $0xc8] sm:$0xff]
        %v206 = vld [vmem:[%s153 + $0xd0] sm:$0xff]
        %v207 = vld [vmem:[%s153 + $0xd8] sm:$0xff]
        %v208 = vld [vmem:[%s153 + $0xe0] sm:$0xff]
        %v209 = vld [vmem:[%s153 + $0xe8] sm:$0xff]
        %v210 = vld [vmem:[%s153 + $0xf0] sm:$0xff]
        %v211 = vld [vmem:[%s153 + $0xf8] sm:$0xff]
        %v212 = vld [vmem:[#allocation5] sm:$0xff]
        %v213 = vld [vmem:[#allocation5 + $0x8] sm:$0xff]
        %v214 = vld [vmem:[#allocation5 + $0x10] sm:$0xff]
        %v215 = vld [vmem:[#allocation5 + $0x18] sm:$0xff]
        %v216 = vld [vmem:[#allocation5 + $0x20] sm:$0xff]
        %v217 = vld [vmem:[#allocation5 + $0x28] sm:$0xff]
        %v218 = vld [vmem:[#allocation5 + $0x30] sm:$0xff]
        %v219 = vld [vmem:[#allocation5 + $0x38] sm:$0xff]
        %v220 = vld [vmem:[#allocation5 + $0x40] sm:$0xff]
        %v221 = vld [vmem:[#allocation5 + $0x48] sm:$0xff]
        %v222 = vld [vmem:[#allocation5 + $0x50] sm:$0xff]
        %v223 = vld [vmem:[#allocation5 + $0x58] sm:$0xff]
        %v224 = vld [vmem:[#allocation5 + $0x60] sm:$0xff]
        %v225 = vld [vmem:[#allocation5 + $0x68] sm:$0xff]
        %v226 = vld [vmem:[#allocation5 + $0x70] sm:$0xff]
        %v227 = vld [vmem:[#allocation5 + $0x78] sm:$0xff]
        %v228 = vld [vmem:[#allocation5 + $0x80] sm:$0xff]
        %v229 = vld [vmem:[#allocation5 + $0x88] sm:$0xff]
        %v230 = vld [vmem:[#allocation5 + $0x90] sm:$0xff]
        %v231 = vld [vmem:[#allocation5 + $0x98] sm:$0xff]
        %v232 = vld [vmem:[#allocation5 + $0xa0] sm:$0xff]
        %v233 = vld [vmem:[#allocation5 + $0xa8] sm:$0xff]
        %v234 = vld [vmem:[#allocation5 + $0xb0] sm:$0xff]
        %v235 = vld [vmem:[#allocation5 + $0xb8] sm:$0xff]
        %v236 = vld [vmem:[#allocation5 + $0xc0] sm:$0xff]
        %v237 = vld [vmem:[#allocation5 + $0xc8] sm:$0xff]
        %v238 = vld [vmem:[#allocation5 + $0xd0] sm:$0xff]
        %v239 = vld [vmem:[#allocation5 + $0xd8] sm:$0xff]
        %v240 = vld [vmem:[#allocation5 + $0xe0] sm:$0xff]
        %v241 = vld [vmem:[#allocation5 + $0xe8] sm:$0xff]
        %v242 = vld [vmem:[#allocation5 + $0xf0] sm:$0xff]
        %v243 = vld [vmem:[#allocation5 + $0xf8] sm:$0xff]
        %244 = vmatprep.subr.mxu0 0.0
        %v245 = vand.u32 %v227, 4294901760
        %246 = vmatpush1.msra.mxu0 %v245
        %247 = vmatprep.subr.mxu0 0.0
        %v248 = vand.u32 %v226, 4294901760
        %249 = vmatpush1.msra.mxu0 %v248
        %250 = vmatprep.subr.mxu0 0.0
        %v251 = vand.u32 %v225, 4294901760
        %252 = vmatpush1.msra.mxu0 %v251
        %253 = vmatprep.subr.mxu0 0.0
        %v254 = vand.u32 %v224, 4294901760
        %255 = vmatpush1.msra.mxu0 %v254
        %256 = vmatprep.subr.mxu0 0.0
        %v257 = vand.u32 %v223, 4294901760
        %258 = vmatpush1.msra.mxu0 %v257
        %259 = vmatprep.subr.mxu0 0.0
        %v260 = vand.u32 %v222, 4294901760
        %261 = vmatpush1.msra.mxu0 %v260
        %262 = vmatprep.subr.mxu0 0.0
        %v263 = vand.u32 %v221, 4294901760
        %264 = vmatpush1.msra.mxu0 %v263
        %265 = vmatprep.subr.mxu0 0.0
        %v266 = vand.u32 %v220, 4294901760
        %267 = vmatpush1.msra.mxu0 %v266
        %268 = vmatprep.subr.mxu0 0.0
        %v269 = vand.u32 %v219, 4294901760
        %270 = vmatpush1.msra.mxu0 %v269
        %271 = vmatprep.subr.mxu0 0.0
        %v272 = vand.u32 %v218, 4294901760
        %273 = vmatpush1.msra.mxu0 %v272
        %274 = vmatprep.subr.mxu0 0.0
        %v275 = vand.u32 %v217, 4294901760
        %276 = vmatpush1.msra.mxu0 %v275
        %277 = vmatprep.subr.mxu0 0.0
        %v278 = vand.u32 %v216, 4294901760
        %279 = vmatpush1.msra.mxu0 %v278
        %280 = vmatprep.subr.mxu0 0.0
        %v281 = vand.u32 %v215, 4294901760
        %282 = vmatpush1.msra.mxu0 %v281
        %283 = vmatprep.subr.mxu0 0.0
        %v284 = vand.u32 %v214, 4294901760
        %285 = vmatpush1.msra.mxu0 %v284
        %286 = vmatprep.subr.mxu0 0.0
        %v287 = vand.u32 %v213, 4294901760
        %288 = vmatpush1.msra.mxu0 %v287
        %289 = vmatprep.subr.mxu0 0.0
        %v290 = vand.u32 %v212, 4294901760
        %291 = vmatpush1.msra.mxu0 %v290
        %292 = vmatprep.subr.mxu0 0.0
        %v293 = vand.u32 %v243, 4294901760
        %294 = vmatpush2.msra.mxu0 %v293
        %295 = vmatprep.subr.mxu0 0.0
        %v296 = vand.u32 %v242, 4294901760
        %297 = vmatpush2.msra.mxu0 %v296
        %298 = vmatprep.subr.mxu0 0.0
        %v299 = vand.u32 %v241, 4294901760
        %300 = vmatpush2.msra.mxu0 %v299
        %301 = vmatprep.subr.mxu0 0.0
        %v302 = vand.u32 %v240, 4294901760
        %303 = vmatpush2.msra.mxu0 %v302
        %304 = vmatprep.subr.mxu0 0.0
        %v305 = vand.u32 %v239, 4294901760
        %306 = vmatpush2.msra.mxu0 %v305
        %307 = vmatprep.subr.mxu0 0.0
        %v308 = vand.u32 %v238, 4294901760
        %309 = vmatpush2.msra.mxu0 %v308
        %310 = vmatprep.subr.mxu0 0.0
        %v311 = vand.u32 %v237, 4294901760
        %312 = vmatpush2.msra.mxu0 %v311
        %313 = vmatprep.subr.mxu0 0.0
        %v314 = vand.u32 %v236, 4294901760
        %315 = vmatpush2.msra.mxu0 %v314
        %316 = vmatprep.subr.mxu0 0.0
        %v317 = vand.u32 %v235, 4294901760
        %318 = vmatpush2.msra.mxu0 %v317
        %319 = vmatprep.subr.mxu0 0.0
        %v320 = vand.u32 %v234, 4294901760
        %321 = vmatpush2.msra.mxu0 %v320
        %322 = vmatprep.subr.mxu0 0.0
        %v323 = vand.u32 %v233, 4294901760
        %324 = vmatpush2.msra.mxu0 %v323
        %325 = vmatprep.subr.mxu0 0.0
        %v326 = vand.u32 %v232, 4294901760
        %327 = vmatpush2.msra.mxu0 %v326
        %328 = vmatprep.subr.mxu0 0.0
        %v329 = vand.u32 %v231, 4294901760
        %330 = vmatpush2.msra.mxu0 %v329
        %331 = vmatprep.subr.mxu0 0.0
        %v332 = vand.u32 %v230, 4294901760
        %333 = vmatpush2.msra.mxu0 %v332
        %334 = vmatprep.subr.mxu0 0.0
        %v335 = vand.u32 %v229, 4294901760
        %336 = vmatpush2.msra.mxu0 %v335
        %337 = vmatprep.subr.mxu0 0.0
        %v338 = vand.u32 %v228, 4294901760
        %339 = vmatpush2.msra.mxu0 %v338
        %v340 = vand.u32 %v181, 4294901760
        %v341 = vsub.f32 %v181, %v340
        %v342 = vand.u32 %v341, 4294901760
        %v343 = vsub.f32 %v341, %v342
        %v344 = vand.u32 %v343, 4294901760
        %345 = vmatprep.mubr.f32.mxu0 %v344
        %v346 = vand.u32 %v180, 4294901760
        %v347 = vsub.f32 %v180, %v346
        %v348 = vand.u32 %v347, 4294901760
        %v349 = vsub.f32 %v347, %v348
        %v350 = vand.u32 %v349, 4294901760
        %351 = vmatmul.mubr.f32.gmra.mxu0 %v350
        %v352 = vpop.f32.mrf.mxu0
        %v353 = vadd.f32 0.0, %v352
        %v354 = vpop.f32.mrf.mxu0
        %v355 = vand.u32 %v183, 4294901760
        %v356 = vsub.f32 %v183, %v355
        %v357 = vand.u32 %v356, 4294901760
        %v358 = vsub.f32 %v356, %v357
        %v359 = vand.u32 %v358, 4294901760
        %360 = vmatprep.mubr.f32.mxu0 %v359
        %v361 = vand.u32 %v182, 4294901760
        %v362 = vsub.f32 %v182, %v361
        %v363 = vand.u32 %v362, 4294901760
        %v364 = vsub.f32 %v362, %v363
        %v365 = vand.u32 %v364, 4294901760
        %366 = vmatmul.mubr.f32.gmra.mxu0 %v365
        %v367 = vpop.f32.mrf.mxu0
        %v368 = vadd.f32 0.0, %v367
        %v369 = vpop.f32.mrf.mxu0
        %v370 = vand.u32 %v185, 4294901760
        %v371 = vsub.f32 %v185, %v370
        %v372 = vand.u32 %v371, 4294901760
        %v373 = vsub.f32 %v371, %v372
        %v374 = vand.u32 %v373, 4294901760
        %375 = vmatprep.mubr.f32.mxu0 %v374
        %v376 = vand.u32 %v184, 4294901760
        %v377 = vsub.f32 %v184, %v376
        %v378 = vand.u32 %v377, 4294901760
        %v379 = vsub.f32 %v377, %v378
        %v380 = vand.u32 %v379, 4294901760
        %381 = vmatmul.mubr.f32.gmra.mxu0 %v380
        %v382 = vpop.f32.mrf.mxu0
        %v383 = vadd.f32 0.0, %v382
        %v384 = vpop.f32.mrf.mxu0
        %v385 = vand.u32 %v187, 4294901760
        %v386 = vsub.f32 %v187, %v385
        %v387 = vand.u32 %v386, 4294901760
        %v388 = vsub.f32 %v386, %v387
        %v389 = vand.u32 %v388, 4294901760
        %390 = vmatprep.mubr.f32.mxu0 %v389
        %v391 = vand.u32 %v186, 4294901760
        %v392 = vsub.f32 %v186, %v391
        %v393 = vand.u32 %v392, 4294901760
        %v394 = vsub.f32 %v392, %v393
        %v395 = vand.u32 %v394, 4294901760
        %396 = vmatmul.mubr.f32.gmra.mxu0 %v395
        %v397 = vpop.f32.mrf.mxu0
        %v398 = vadd.f32 0.0, %v397
        %v399 = vpop.f32.mrf.mxu0
        %v400 = vand.u32 %v189, 4294901760
        %v401 = vsub.f32 %v189, %v400
        %v402 = vand.u32 %v401, 4294901760
        %v403 = vsub.f32 %v401, %v402
        %v404 = vand.u32 %v403, 4294901760
        %405 = vmatprep.mubr.f32.mxu0 %v404
        %v406 = vand.u32 %v188, 4294901760
        %v407 = vsub.f32 %v188, %v406
        %v408 = vand.u32 %v407, 4294901760
        %v409 = vsub.f32 %v407, %v408
        %v410 = vand.u32 %v409, 4294901760
        %411 = vmatmul.mubr.f32.gmra.mxu0 %v410
        %v412 = vpop.f32.mrf.mxu0
        %v413 = vadd.f32 0.0, %v412
        %v414 = vpop.f32.mrf.mxu0
        %v415 = vand.u32 %v191, 4294901760
        %v416 = vsub.f32 %v191, %v415
        %v417 = vand.u32 %v416, 4294901760
        %v418 = vsub.f32 %v416, %v417
        %v419 = vand.u32 %v418, 4294901760
        %420 = vmatprep.mubr.f32.mxu0 %v419
        %v421 = vand.u32 %v190, 4294901760
        %v422 = vsub.f32 %v190, %v421
        %v423 = vand.u32 %v422, 4294901760
        %v424 = vsub.f32 %v422, %v423
        %v425 = vand.u32 %v424, 4294901760
        %426 = vmatmul.mubr.f32.gmra.mxu0 %v425
        %v427 = vpop.f32.mrf.mxu0
        %v428 = vadd.f32 0.0, %v427
        %v429 = vpop.f32.mrf.mxu0
        %v430 = vand.u32 %v193, 4294901760
        %v431 = vsub.f32 %v193, %v430
        %v432 = vand.u32 %v431, 4294901760
        %v433 = vsub.f32 %v431, %v432
        %v434 = vand.u32 %v433, 4294901760
        %435 = vmatprep.mubr.f32.mxu0 %v434
        %v436 = vand.u32 %v192, 4294901760
        %v437 = vsub.f32 %v192, %v436
        %v438 = vand.u32 %v437, 4294901760
        %v439 = vsub.f32 %v437, %v438
        %v440 = vand.u32 %v439, 4294901760
        %441 = vmatmul.mubr.f32.gmra.mxu0 %v440
        %v442 = vpop.f32.mrf.mxu0
        %v443 = vadd.f32 0.0, %v442
        %v444 = vpop.f32.mrf.mxu0
        %v445 = vand.u32 %v195, 4294901760
        %v446 = vsub.f32 %v195, %v445
        %v447 = vand.u32 %v446, 4294901760
        %v448 = vsub.f32 %v446, %v447
        %v449 = vand.u32 %v448, 4294901760
        %450 = vmatprep.mubr.f32.mxu0 %v449
        %v451 = vand.u32 %v194, 4294901760
        %v452 = vsub.f32 %v194, %v451
        %v453 = vand.u32 %v452, 4294901760
        %v454 = vsub.f32 %v452, %v453
        %v455 = vand.u32 %v454, 4294901760
        %456 = vmatmul.mubr.f32.gmra.mxu0 %v455
        %v457 = vpop.f32.mrf.mxu0
        %v458 = vadd.f32 0.0, %v457
        %v459 = vpop.f32.mrf.mxu0
        %v460 = vand.u32 %v197, 4294901760
        %v461 = vsub.f32 %v197, %v460
        %v462 = vand.u32 %v461, 4294901760
        %v463 = vsub.f32 %v461, %v462
        %v464 = vand.u32 %v463, 4294901760
        %465 = vmatprep.mubr.f32.mxu0 %v464
        %v466 = vand.u32 %v196, 4294901760
        %v467 = vsub.f32 %v196, %v466
        %v468 = vand.u32 %v467, 4294901760
        %v469 = vsub.f32 %v467, %v468
        %v470 = vand.u32 %v469, 4294901760
        %471 = vmatmul.mubr.f32.gmra.mxu0 %v470
        %v472 = vpop.f32.mrf.mxu0
        %v473 = vadd.f32 0.0, %v472
        %v474 = vpop.f32.mrf.mxu0
        %v475 = vand.u32 %v199, 4294901760
        %v476 = vsub.f32 %v199, %v475
        %v477 = vand.u32 %v476, 4294901760
        %v478 = vsub.f32 %v476, %v477
        %v479 = vand.u32 %v478, 4294901760
        %480 = vmatprep.mubr.f32.mxu0 %v479
        %v481 = vand.u32 %v198, 4294901760
        %v482 = vsub.f32 %v198, %v481
        %v483 = vand.u32 %v482, 4294901760
        %v484 = vsub.f32 %v482, %v483
        %v485 = vand.u32 %v484, 4294901760
        %486 = vmatmul.mubr.f32.gmra.mxu0 %v485
        %v487 = vpop.f32.mrf.mxu0
        %v488 = vadd.f32 0.0, %v487
        %v489 = vpop.f32.mrf.mxu0
        %v490 = vand.u32 %v201, 4294901760
        %v491 = vsub.f32 %v201, %v490
        %v492 = vand.u32 %v491, 4294901760
        %v493 = vsub.f32 %v491, %v492
        %v494 = vand.u32 %v493, 4294901760
        %495 = vmatprep.mubr.f32.mxu0 %v494
        %v496 = vand.u32 %v200, 4294901760
        %v497 = vsub.f32 %v200, %v496
        %v498 = vand.u32 %v497, 4294901760
        %v499 = vsub.f32 %v497, %v498
        %v500 = vand.u32 %v499, 4294901760
        %501 = vmatmul.mubr.f32.gmra.mxu0 %v500
        %v502 = vpop.f32.mrf.mxu0
        %v503 = vadd.f32 0.0, %v502
        %v504 = vpop.f32.mrf.mxu0
        %v505 = vand.u32 %v203, 4294901760
        %v506 = vsub.f32 %v203, %v505
        %v507 = vand.u32 %v506, 4294901760
        %v508 = vsub.f32 %v506, %v507
        %v509 = vand.u32 %v508, 4294901760
        %510 = vmatprep.mubr.f32.mxu0 %v509
        %v511 = vand.u32 %v202, 4294901760
        %v512 = vsub.f32 %v202, %v511
        %v513 = vand.u32 %v512, 4294901760
        %v514 = vsub.f32 %v512, %v513
        %v515 = vand.u32 %v514, 4294901760
        %516 = vmatmul.mubr.f32.gmra.mxu0 %v515
        %v517 = vpop.f32.mrf.mxu0
        %v518 = vadd.f32 0.0, %v517
        %v519 = vpop.f32.mrf.mxu0
        %v520 = vand.u32 %v205, 4294901760
        %v521 = vsub.f32 %v205, %v520
        %v522 = vand.u32 %v521, 4294901760
        %v523 = vsub.f32 %v521, %v522
        %v524 = vand.u32 %v523, 4294901760
        %525 = vmatprep.mubr.f32.mxu0 %v524
        %v526 = vand.u32 %v204, 4294901760
        %v527 = vsub.f32 %v204, %v526
        %v528 = vand.u32 %v527, 4294901760
        %v529 = vsub.f32 %v527, %v528
        %v530 = vand.u32 %v529, 4294901760
        %531 = vmatmul.mubr.f32.gmra.mxu0 %v530
        %v532 = vpop.f32.mrf.mxu0
        %v533 = vadd.f32 0.0, %v532
        %v534 = vpop.f32.mrf.mxu0
        %v535 = vand.u32 %v207, 4294901760
        %v536 = vsub.f32 %v207, %v535
        %v537 = vand.u32 %v536, 4294901760
        %v538 = vsub.f32 %v536, %v537
        %v539 = vand.u32 %v538, 4294901760
        %540 = vmatprep.mubr.f32.mxu0 %v539
        %v541 = vand.u32 %v206, 4294901760
        %v542 = vsub.f32 %v206, %v541
        %v543 = vand.u32 %v542, 4294901760
        %v544 = vsub.f32 %v542, %v543
        %v545 = vand.u32 %v544, 4294901760
        %546 = vmatmul.mubr.f32.gmra.mxu0 %v545
        %v547 = vpop.f32.mrf.mxu0
        %v548 = vadd.f32 0.0, %v547
        %v549 = vpop.f32.mrf.mxu0
        %v550 = vand.u32 %v209, 4294901760
        %v551 = vsub.f32 %v209, %v550
        %v552 = vand.u32 %v551, 4294901760
        %v553 = vsub.f32 %v551, %v552
        %v554 = vand.u32 %v553, 4294901760
        %555 = vmatprep.mubr.f32.mxu0 %v554
        %v556 = vand.u32 %v208, 4294901760
        %v557 = vsub.f32 %v208, %v556
        %v558 = vand.u32 %v557, 4294901760
        %v559 = vsub.f32 %v557, %v558
        %v560 = vand.u32 %v559, 4294901760
        %561 = vmatmul.mubr.f32.gmra.mxu0 %v560
        %v562 = vpop.f32.mrf.mxu0
        %v563 = vadd.f32 0.0, %v562
        %v564 = vpop.f32.mrf.mxu0
        %v565 = vand.u32 %v211, 4294901760
        %v566 = vsub.f32 %v211, %v565
        %v567 = vand.u32 %v566, 4294901760
        %v568 = vsub.f32 %v566, %v567
        %v569 = vand.u32 %v568, 4294901760
        %570 = vmatprep.mubr.f32.mxu0 %v569
        %v571 = vand.u32 %v210, 4294901760
        %v572 = vsub.f32 %v210, %v571
        %v573 = vand.u32 %v572, 4294901760
        %v574 = vsub.f32 %v572, %v573
        %v575 = vand.u32 %v574, 4294901760
        %576 = vmatmul.mubr.f32.gmra.mxu0 %v575
        %v577 = vpop.f32.mrf.mxu0
        %v578 = vadd.f32 0.0, %v577
        %v579 = vpop.f32.mrf.mxu0
        %580 = vdwg.mxu0
        %581 = vmatprep.subr.mxu0 0.0
        %v582 = vand.u32 %v227, 4294901760
        %v583 = vsub.f32 %v227, %v582
        %v584 = vand.u32 %v583, 4294901760
        %v585 = vsub.f32 %v583, %v584
        %v586 = vand.u32 %v585, 4294901760
        %587 = vmatpush1.msra.mxu0 %v586
        %588 = vmatprep.subr.mxu0 0.0
        %v589 = vand.u32 %v226, 4294901760
        %v590 = vsub.f32 %v226, %v589
        %v591 = vand.u32 %v590, 4294901760
        %v592 = vsub.f32 %v590, %v591
        %v593 = vand.u32 %v592, 4294901760
        %594 = vmatpush1.msra.mxu0 %v593
        %595 = vmatprep.subr.mxu0 0.0
        %v596 = vand.u32 %v225, 4294901760
        %v597 = vsub.f32 %v225, %v596
        %v598 = vand.u32 %v597, 4294901760
        %v599 = vsub.f32 %v597, %v598
        %v600 = vand.u32 %v599, 4294901760
        %601 = vmatpush1.msra.mxu0 %v600
        %602 = vmatprep.subr.mxu0 0.0
        %v603 = vand.u32 %v224, 4294901760
        %v604 = vsub.f32 %v224, %v603
        %v605 = vand.u32 %v604, 4294901760
        %v606 = vsub.f32 %v604, %v605
        %v607 = vand.u32 %v606, 4294901760
        %608 = vmatpush1.msra.mxu0 %v607
        %609 = vmatprep.subr.mxu0 0.0
        %v610 = vand.u32 %v223, 4294901760
        %v611 = vsub.f32 %v223, %v610
        %v612 = vand.u32 %v611, 4294901760
        %v613 = vsub.f32 %v611, %v612
        %v614 = vand.u32 %v613, 4294901760
        %615 = vmatpush1.msra.mxu0 %v614
        %616 = vmatprep.subr.mxu0 0.0
        %v617 = vand.u32 %v222, 4294901760
        %v618 = vsub.f32 %v222, %v617
        %v619 = vand.u32 %v618, 4294901760
        %v620 = vsub.f32 %v618, %v619
        %v621 = vand.u32 %v620, 4294901760
        %622 = vmatpush1.msra.mxu0 %v621
        %623 = vmatprep.subr.mxu0 0.0
        %v624 = vand.u32 %v221, 4294901760
        %v625 = vsub.f32 %v221, %v624
        %v626 = vand.u32 %v625, 4294901760
        %v627 = vsub.f32 %v625, %v626
        %v628 = vand.u32 %v627, 4294901760
        %629 = vmatpush1.msra.mxu0 %v628
        %630 = vmatprep.subr.mxu0 0.0
        %v631 = vand.u32 %v220, 4294901760
        %v632 = vsub.f32 %v220, %v631
        %v633 = vand.u32 %v632, 4294901760
        %v634 = vsub.f32 %v632, %v633
        %v635 = vand.u32 %v634, 4294901760
        %636 = vmatpush1.msra.mxu0 %v635
        %637 = vmatprep.subr.mxu0 0.0
        %v638 = vand.u32 %v219, 4294901760
        %v639 = vsub.f32 %v219, %v638
        %v640 = vand.u32 %v639, 4294901760
        %v641 = vsub.f32 %v639, %v640
        %v642 = vand.u32 %v641, 4294901760
        %643 = vmatpush1.msra.mxu0 %v642
        %644 = vmatprep.subr.mxu0 0.0
        %v645 = vand.u32 %v218, 4294901760
        %v646 = vsub.f32 %v218, %v645
        %v647 = vand.u32 %v646, 4294901760
        %v648 = vsub.f32 %v646, %v647
        %v649 = vand.u32 %v648, 4294901760
        %650 = vmatpush1.msra.mxu0 %v649
        %651 = vmatprep.subr.mxu0 0.0
        %v652 = vand.u32 %v217, 4294901760
        %v653 = vsub.f32 %v217, %v652
        %v654 = vand.u32 %v653, 4294901760
        %v655 = vsub.f32 %v653, %v654
        %v656 = vand.u32 %v655, 4294901760
        %657 = vmatpush1.msra.mxu0 %v656
        %658 = vmatprep.subr.mxu0 0.0
        %v659 = vand.u32 %v216, 4294901760
        %v660 = vsub.f32 %v216, %v659
        %v661 = vand.u32 %v660, 4294901760
        %v662 = vsub.f32 %v660, %v661
        %v663 = vand.u32 %v662, 4294901760
        %664 = vmatpush1.msra.mxu0 %v663
        %665 = vmatprep.subr.mxu0 0.0
        %v666 = vand.u32 %v215, 4294901760
        %v667 = vsub.f32 %v215, %v666
        %v668 = vand.u32 %v667, 4294901760
        %v669 = vsub.f32 %v667, %v668
        %v670 = vand.u32 %v669, 4294901760
        %671 = vmatpush1.msra.mxu0 %v670
        %672 = vmatprep.subr.mxu0 0.0
        %v673 = vand.u32 %v214, 4294901760
        %v674 = vsub.f32 %v214, %v673
        %v675 = vand.u32 %v674, 4294901760
        %v676 = vsub.f32 %v674, %v675
        %v677 = vand.u32 %v676, 4294901760
        %678 = vmatpush1.msra.mxu0 %v677
        %679 = vmatprep.subr.mxu0 0.0
        %v680 = vand.u32 %v213, 4294901760
        %v681 = vsub.f32 %v213, %v680
        %v682 = vand.u32 %v681, 4294901760
        %v683 = vsub.f32 %v681, %v682
        %v684 = vand.u32 %v683, 4294901760
        %685 = vmatpush1.msra.mxu0 %v684
        %686 = vmatprep.subr.mxu0 0.0
        %v687 = vand.u32 %v212, 4294901760
        %v688 = vsub.f32 %v212, %v687
        %v689 = vand.u32 %v688, 4294901760
        %v690 = vsub.f32 %v688, %v689
        %v691 = vand.u32 %v690, 4294901760
        %692 = vmatpush1.msra.mxu0 %v691
        %693 = vmatprep.subr.mxu0 0.0
        %v694 = vand.u32 %v243, 4294901760
        %v695 = vsub.f32 %v243, %v694
        %v696 = vand.u32 %v695, 4294901760
        %v697 = vsub.f32 %v695, %v696
        %v698 = vand.u32 %v697, 4294901760
        %699 = vmatpush2.msra.mxu0 %v698
        %700 = vmatprep.subr.mxu0 0.0
        %v701 = vand.u32 %v242, 4294901760
        %v702 = vsub.f32 %v242, %v701
        %v703 = vand.u32 %v702, 4294901760
        %v704 = vsub.f32 %v702, %v703
        %v705 = vand.u32 %v704, 4294901760
        %706 = vmatpush2.msra.mxu0 %v705
        %707 = vmatprep.subr.mxu0 0.0
        %v708 = vand.u32 %v241, 4294901760
        %v709 = vsub.f32 %v241, %v708
        %v710 = vand.u32 %v709, 4294901760
        %v711 = vsub.f32 %v709, %v710
        %v712 = vand.u32 %v711, 4294901760
        %713 = vmatpush2.msra.mxu0 %v712
        %714 = vmatprep.subr.mxu0 0.0
        %v715 = vand.u32 %v240, 4294901760
        %v716 = vsub.f32 %v240, %v715
        %v717 = vand.u32 %v716, 4294901760
        %v718 = vsub.f32 %v716, %v717
        %v719 = vand.u32 %v718, 4294901760
        %720 = vmatpush2.msra.mxu0 %v719
        %721 = vmatprep.subr.mxu0 0.0
        %v722 = vand.u32 %v239, 4294901760
        %v723 = vsub.f32 %v239, %v722
        %v724 = vand.u32 %v723, 4294901760
        %v725 = vsub.f32 %v723, %v724
        %v726 = vand.u32 %v725, 4294901760
        %727 = vmatpush2.msra.mxu0 %v726
        %728 = vmatprep.subr.mxu0 0.0
        %v729 = vand.u32 %v238, 4294901760
        %v730 = vsub.f32 %v238, %v729
        %v731 = vand.u32 %v730, 4294901760
        %v732 = vsub.f32 %v730, %v731
        %v733 = vand.u32 %v732, 4294901760
        %734 = vmatpush2.msra.mxu0 %v733
        %735 = vmatprep.subr.mxu0 0.0
        %v736 = vand.u32 %v237, 4294901760
        %v737 = vsub.f32 %v237, %v736
        %v738 = vand.u32 %v737, 4294901760
        %v739 = vsub.f32 %v737, %v738
        %v740 = vand.u32 %v739, 4294901760
        %741 = vmatpush2.msra.mxu0 %v740
        %742 = vmatprep.subr.mxu0 0.0
        %v743 = vand.u32 %v236, 4294901760
        %v744 = vsub.f32 %v236, %v743
        %v745 = vand.u32 %v744, 4294901760
        %v746 = vsub.f32 %v744, %v745
        %v747 = vand.u32 %v746, 4294901760
        %748 = vmatpush2.msra.mxu0 %v747
        %749 = vmatprep.subr.mxu0 0.0
        %v750 = vand.u32 %v235, 4294901760
        %v751 = vsub.f32 %v235, %v750
        %v752 = vand.u32 %v751, 4294901760
        %v753 = vsub.f32 %v751, %v752
        %v754 = vand.u32 %v753, 4294901760
        %755 = vmatpush2.msra.mxu0 %v754
        %756 = vmatprep.subr.mxu0 0.0
        %v757 = vand.u32 %v234, 4294901760
        %v758 = vsub.f32 %v234, %v757
        %v759 = vand.u32 %v758, 4294901760
        %v760 = vsub.f32 %v758, %v759
        %v761 = vand.u32 %v760, 4294901760
        %762 = vmatpush2.msra.mxu0 %v761
        %763 = vmatprep.subr.mxu0 0.0
        %v764 = vand.u32 %v233, 4294901760
        %v765 = vsub.f32 %v233, %v764
        %v766 = vand.u32 %v765, 4294901760
        %v767 = vsub.f32 %v765, %v766
        %v768 = vand.u32 %v767, 4294901760
        %769 = vmatpush2.msra.mxu0 %v768
        %770 = vmatprep.subr.mxu0 0.0
        %v771 = vand.u32 %v232, 4294901760
        %v772 = vsub.f32 %v232, %v771
        %v773 = vand.u32 %v772, 4294901760
        %v774 = vsub.f32 %v772, %v773
        %v775 = vand.u32 %v774, 4294901760
        %776 = vmatpush2.msra.mxu0 %v775
        %777 = vmatprep.subr.mxu0 0.0
        %v778 = vand.u32 %v231, 4294901760
        %v779 = vsub.f32 %v231, %v778
        %v780 = vand.u32 %v779, 4294901760
        %v781 = vsub.f32 %v779, %v780
        %v782 = vand.u32 %v781, 4294901760
        %783 = vmatpush2.msra.mxu0 %v782
        %784 = vmatprep.subr.mxu0 0.0
        %v785 = vand.u32 %v230, 4294901760
        %v786 = vsub.f32 %v230, %v785
        %v787 = vand.u32 %v786, 4294901760
        %v788 = vsub.f32 %v786, %v787
        %v789 = vand.u32 %v788, 4294901760
        %790 = vmatpush2.msra.mxu0 %v789
        %791 = vmatprep.subr.mxu0 0.0
        %v792 = vand.u32 %v229, 4294901760
        %v793 = vsub.f32 %v229, %v792
        %v794 = vand.u32 %v793, 4294901760
        %v795 = vsub.f32 %v793, %v794
        %v796 = vand.u32 %v795, 4294901760
        %797 = vmatpush2.msra.mxu0 %v796
        %798 = vmatprep.subr.mxu0 0.0
        %v799 = vand.u32 %v228, 4294901760
        %v800 = vsub.f32 %v228, %v799
        %v801 = vand.u32 %v800, 4294901760
        %v802 = vsub.f32 %v800, %v801
        %v803 = vand.u32 %v802, 4294901760
        %804 = vmatpush2.msra.mxu0 %v803
        %v805 = vand.u32 %v181, 4294901760
        %806 = vmatprep.mubr.f32.mxu0 %v805
        %v807 = vand.u32 %v180, 4294901760
        %808 = vmatmul.mubr.f32.gmra.mxu0 %v807
        %v809 = vpop.f32.mrf.mxu0
        %v810 = vadd.f32 %v353, %v809
        %v811 = vpop.f32.mrf.mxu0
        %v812 = vand.u32 %v183, 4294901760
        %813 = vmatprep.mubr.f32.mxu0 %v812
        %v814 = vand.u32 %v182, 4294901760
        %815 = vmatmul.mubr.f32.gmra.mxu0 %v814
        %v816 = vpop.f32.mrf.mxu0
        %v817 = vadd.f32 %v368, %v816
        %v818 = vpop.f32.mrf.mxu0
        %v819 = vand.u32 %v185, 4294901760
        %820 = vmatprep.mubr.f32.mxu0 %v819
        %v821 = vand.u32 %v184, 4294901760
        %822 = vmatmul.mubr.f32.gmra.mxu0 %v821
        %v823 = vpop.f32.mrf.mxu0
        %v824 = vadd.f32 %v383, %v823
        %v825 = vpop.f32.mrf.mxu0
        %v826 = vand.u32 %v187, 4294901760
        %827 = vmatprep.mubr.f32.mxu0 %v826
        %v828 = vand.u32 %v186, 4294901760
        %829 = vmatmul.mubr.f32.gmra.mxu0 %v828
        %v830 = vpop.f32.mrf.mxu0
        %v831 = vadd.f32 %v398, %v830
        %v832 = vpop.f32.mrf.mxu0
        %v833 = vand.u32 %v189, 4294901760
        %834 = vmatprep.mubr.f32.mxu0 %v833
        %v835 = vand.u32 %v188, 4294901760
        %836 = vmatmul.mubr.f32.gmra.mxu0 %v835
        %v837 = vpop.f32.mrf.mxu0
        %v838 = vadd.f32 %v413, %v837
        %v839 = vpop.f32.mrf.mxu0
        %v840 = vand.u32 %v191, 4294901760
        %841 = vmatprep.mubr.f32.mxu0 %v840
        %v842 = vand.u32 %v190, 4294901760
        %843 = vmatmul.mubr.f32.gmra.mxu0 %v842
        %v844 = vpop.f32.mrf.mxu0
        %v845 = vadd.f32 %v428, %v844
        %v846 = vpop.f32.mrf.mxu0
        %v847 = vand.u32 %v193, 4294901760
        %848 = vmatprep.mubr.f32.mxu0 %v847
        %v849 = vand.u32 %v192, 4294901760
        %850 = vmatmul.mubr.f32.gmra.mxu0 %v849
        %v851 = vpop.f32.mrf.mxu0
        %v852 = vadd.f32 %v443, %v851
        %v853 = vpop.f32.mrf.mxu0
        %v854 = vand.u32 %v195, 4294901760
        %855 = vmatprep.mubr.f32.mxu0 %v854
        %v856 = vand.u32 %v194, 4294901760
        %857 = vmatmul.mubr.f32.gmra.mxu0 %v856
        %v858 = vpop.f32.mrf.mxu0
        %v859 = vadd.f32 %v458, %v858
        %v860 = vpop.f32.mrf.mxu0
        %v861 = vand.u32 %v197, 4294901760
        %862 = vmatprep.mubr.f32.mxu0 %v861
        %v863 = vand.u32 %v196, 4294901760
        %864 = vmatmul.mubr.f32.gmra.mxu0 %v863
        %v865 = vpop.f32.mrf.mxu0
        %v866 = vadd.f32 %v473, %v865
        %v867 = vpop.f32.mrf.mxu0
        %v868 = vand.u32 %v199, 4294901760
        %869 = vmatprep.mubr.f32.mxu0 %v868
        %v870 = vand.u32 %v198, 4294901760
        %871 = vmatmul.mubr.f32.gmra.mxu0 %v870
        %v872 = vpop.f32.mrf.mxu0
        %v873 = vadd.f32 %v488, %v872
        %v874 = vpop.f32.mrf.mxu0
        %v875 = vand.u32 %v201, 4294901760
        %876 = vmatprep.mubr.f32.mxu0 %v875
        %v877 = vand.u32 %v200, 4294901760
        %878 = vmatmul.mubr.f32.gmra.mxu0 %v877
        %v879 = vpop.f32.mrf.mxu0
        %v880 = vadd.f32 %v503, %v879
        %v881 = vpop.f32.mrf.mxu0
        %v882 = vand.u32 %v203, 4294901760
        %883 = vmatprep.mubr.f32.mxu0 %v882
        %v884 = vand.u32 %v202, 4294901760
        %885 = vmatmul.mubr.f32.gmra.mxu0 %v884
        %v886 = vpop.f32.mrf.mxu0
        %v887 = vadd.f32 %v518, %v886
        %v888 = vpop.f32.mrf.mxu0
        %v889 = vand.u32 %v205, 4294901760
        %890 = vmatprep.mubr.f32.mxu0 %v889
        %v891 = vand.u32 %v204, 4294901760
        %892 = vmatmul.mubr.f32.gmra.mxu0 %v891
        %v893 = vpop.f32.mrf.mxu0
        %v894 = vadd.f32 %v533, %v893
        %v895 = vpop.f32.mrf.mxu0
        %v896 = vand.u32 %v207, 4294901760
        %897 = vmatprep.mubr.f32.mxu0 %v896
        %v898 = vand.u32 %v206, 4294901760
        %899 = vmatmul.mubr.f32.gmra.mxu0 %v898
        %v900 = vpop.f32.mrf.mxu0
        %v901 = vadd.f32 %v548, %v900
        %v902 = vpop.f32.mrf.mxu0
        %v903 = vand.u32 %v209, 4294901760
        %904 = vmatprep.mubr.f32.mxu0 %v903
        %v905 = vand.u32 %v208, 4294901760
        %906 = vmatmul.mubr.f32.gmra.mxu0 %v905
        %v907 = vpop.f32.mrf.mxu0
        %v908 = vadd.f32 %v563, %v907
        %v909 = vpop.f32.mrf.mxu0
        %v910 = vand.u32 %v211, 4294901760
        %911 = vmatprep.mubr.f32.mxu0 %v910
        %v912 = vand.u32 %v210, 4294901760
        %913 = vmatmul.mubr.f32.gmra.mxu0 %v912
        %v914 = vpop.f32.mrf.mxu0
        %v915 = vadd.f32 %v578, %v914
        %v916 = vpop.f32.mrf.mxu0
        %917 = vdwg.mxu0
        %918 = vmatprep.subr.mxu0 0.0
        %v919 = vand.u32 %v227, 4294901760
        %v920 = vsub.f32 %v227, %v919
        %921 = vmatpush1.msra.mxu0 %v920
        %922 = vmatprep.subr.mxu0 0.0
        %v923 = vand.u32 %v226, 4294901760
        %v924 = vsub.f32 %v226, %v923
        %925 = vmatpush1.msra.mxu0 %v924
        %926 = vmatprep.subr.mxu0 0.0
        %v927 = vand.u32 %v225, 4294901760
        %v928 = vsub.f32 %v225, %v927
        %929 = vmatpush1.msra.mxu0 %v928
        %930 = vmatprep.subr.mxu0 0.0
        %v931 = vand.u32 %v224, 4294901760
        %v932 = vsub.f32 %v224, %v931
        %933 = vmatpush1.msra.mxu0 %v932
        %934 = vmatprep.subr.mxu0 0.0
        %v935 = vand.u32 %v223, 4294901760
        %v936 = vsub.f32 %v223, %v935
        %937 = vmatpush1.msra.mxu0 %v936
        %938 = vmatprep.subr.mxu0 0.0
        %v939 = vand.u32 %v222, 4294901760
        %v940 = vsub.f32 %v222, %v939
        %941 = vmatpush1.msra.mxu0 %v940
        %942 = vmatprep.subr.mxu0 0.0
        %v943 = vand.u32 %v221, 4294901760
        %v944 = vsub.f32 %v221, %v943
        %945 = vmatpush1.msra.mxu0 %v944
        %946 = vmatprep.subr.mxu0 0.0
        %v947 = vand.u32 %v220, 4294901760
        %v948 = vsub.f32 %v220, %v947
        %949 = vmatpush1.msra.mxu0 %v948
        %950 = vmatprep.subr.mxu0 0.0
        %v951 = vand.u32 %v219, 4294901760
        %v952 = vsub.f32 %v219, %v951
        %953 = vmatpush1.msra.mxu0 %v952
        %954 = vmatprep.subr.mxu0 0.0
        %v955 = vand.u32 %v218, 4294901760
        %v956 = vsub.f32 %v218, %v955
        %957 = vmatpush1.msra.mxu0 %v956
        %958 = vmatprep.subr.mxu0 0.0
        %v959 = vand.u32 %v217, 4294901760
        %v960 = vsub.f32 %v217, %v959
        %961 = vmatpush1.msra.mxu0 %v960
        %962 = vmatprep.subr.mxu0 0.0
        %v963 = vand.u32 %v216, 4294901760
        %v964 = vsub.f32 %v216, %v963
        %965 = vmatpush1.msra.mxu0 %v964
        %966 = vmatprep.subr.mxu0 0.0
        %v967 = vand.u32 %v215, 4294901760
        %v968 = vsub.f32 %v215, %v967
        %969 = vmatpush1.msra.mxu0 %v968
        %970 = vmatprep.subr.mxu0 0.0
        %v971 = vand.u32 %v214, 4294901760
        %v972 = vsub.f32 %v214, %v971
        %973 = vmatpush1.msra.mxu0 %v972
        %974 = vmatprep.subr.mxu0 0.0
        %v975 = vand.u32 %v213, 4294901760
        %v976 = vsub.f32 %v213, %v975
        %977 = vmatpush1.msra.mxu0 %v976
        %978 = vmatprep.subr.mxu0 0.0
        %v979 = vand.u32 %v212, 4294901760
        %v980 = vsub.f32 %v212, %v979
        %981 = vmatpush1.msra.mxu0 %v980
        %982 = vmatprep.subr.mxu0 0.0
        %v983 = vand.u32 %v243, 4294901760
        %v984 = vsub.f32 %v243, %v983
        %985 = vmatpush2.msra.mxu0 %v984
        %986 = vmatprep.subr.mxu0 0.0
        %v987 = vand.u32 %v242, 4294901760
        %v988 = vsub.f32 %v242, %v987
        %989 = vmatpush2.msra.mxu0 %v988
        %990 = vmatprep.subr.mxu0 0.0
        %v991 = vand.u32 %v241, 4294901760
        %v992 = vsub.f32 %v241, %v991
        %993 = vmatpush2.msra.mxu0 %v992
        %994 = vmatprep.subr.mxu0 0.0
        %v995 = vand.u32 %v240, 4294901760
        %v996 = vsub.f32 %v240, %v995
        %997 = vmatpush2.msra.mxu0 %v996
        %998 = vmatprep.subr.mxu0 0.0
        %v999 = vand.u32 %v239, 4294901760
        %v1000 = vsub.f32 %v239, %v999
        %1001 = vmatpush2.msra.mxu0 %v1000
        %1002 = vmatprep.subr.mxu0 0.0
        %v1003 = vand.u32 %v238, 4294901760
        %v1004 = vsub.f32 %v238, %v1003
        %1005 = vmatpush2.msra.mxu0 %v1004
        %1006 = vmatprep.subr.mxu0 0.0
        %v1007 = vand.u32 %v237, 4294901760
        %v1008 = vsub.f32 %v237, %v1007
        %1009 = vmatpush2.msra.mxu0 %v1008
        %1010 = vmatprep.subr.mxu0 0.0
        %v1011 = vand.u32 %v236, 4294901760
        %v1012 = vsub.f32 %v236, %v1011
        %1013 = vmatpush2.msra.mxu0 %v1012
        %1014 = vmatprep.subr.mxu0 0.0
        %v1015 = vand.u32 %v235, 4294901760
        %v1016 = vsub.f32 %v235, %v1015
        %1017 = vmatpush2.msra.mxu0 %v1016
        %1018 = vmatprep.subr.mxu0 0.0
        %v1019 = vand.u32 %v234, 4294901760
        %v1020 = vsub.f32 %v234, %v1019
        %1021 = vmatpush2.msra.mxu0 %v1020
        %1022 = vmatprep.subr.mxu0 0.0
        %v1023 = vand.u32 %v233, 4294901760
        %v1024 = vsub.f32 %v233, %v1023
        %1025 = vmatpush2.msra.mxu0 %v1024
        %1026 = vmatprep.subr.mxu0 0.0
        %v1027 = vand.u32 %v232, 4294901760
        %v1028 = vsub.f32 %v232, %v1027
        %1029 = vmatpush2.msra.mxu0 %v1028
        %1030 = vmatprep.subr.mxu0 0.0
        %v1031 = vand.u32 %v231, 4294901760
        %v1032 = vsub.f32 %v231, %v1031
        %1033 = vmatpush2.msra.mxu0 %v1032
        %1034 = vmatprep.subr.mxu0 0.0
        %v1035 = vand.u32 %v230, 4294901760
        %v1036 = vsub.f32 %v230, %v1035
        %1037 = vmatpush2.msra.mxu0 %v1036
        %1038 = vmatprep.subr.mxu0 0.0
        %v1039 = vand.u32 %v229, 4294901760
        %v1040 = vsub.f32 %v229, %v1039
        %1041 = vmatpush2.msra.mxu0 %v1040
        %1042 = vmatprep.subr.mxu0 0.0
        %v1043 = vand.u32 %v228, 4294901760
        %v1044 = vsub.f32 %v228, %v1043
        %1045 = vmatpush2.msra.mxu0 %v1044
        %v1046 = vand.u32 %v181, 4294901760
        %v1047 = vsub.f32 %v181, %v1046
        %1048 = vmatprep.mubr.f32.mxu0 %v1047
        %v1049 = vand.u32 %v180, 4294901760
        %v1050 = vsub.f32 %v180, %v1049
        %1051 = vmatmul.mubr.f32.gmra.mxu0 %v1050
        %v1052 = vpop.f32.mrf.mxu0
        %v1053 = vadd.f32 %v810, %v1052
        %v1054 = vpop.f32.mrf.mxu0
        %v1055 = vand.u32 %v183, 4294901760
        %v1056 = vsub.f32 %v183, %v1055
        %1057 = vmatprep.mubr.f32.mxu0 %v1056
        %v1058 = vand.u32 %v182, 4294901760
        %v1059 = vsub.f32 %v182, %v1058
        %1060 = vmatmul.mubr.f32.gmra.mxu0 %v1059
        %v1061 = vpop.f32.mrf.mxu0
        %v1062 = vadd.f32 %v817, %v1061
        %v1063 = vpop.f32.mrf.mxu0
        %v1064 = vand.u32 %v185, 4294901760
        %v1065 = vsub.f32 %v185, %v1064
        %1066 = vmatprep.mubr.f32.mxu0 %v1065
        %v1067 = vand.u32 %v184, 4294901760
        %v1068 = vsub.f32 %v184, %v1067
        %1069 = vmatmul.mubr.f32.gmra.mxu0 %v1068
        %v1070 = vpop.f32.mrf.mxu0
        %v1071 = vadd.f32 %v824, %v1070
        %v1072 = vpop.f32.mrf.mxu0
        %v1073 = vand.u32 %v187, 4294901760
        %v1074 = vsub.f32 %v187, %v1073
        %1075 = vmatprep.mubr.f32.mxu0 %v1074
        %v1076 = vand.u32 %v186, 4294901760
        %v1077 = vsub.f32 %v186, %v1076
        %1078 = vmatmul.mubr.f32.gmra.mxu0 %v1077
        %v1079 = vpop.f32.mrf.mxu0
        %v1080 = vadd.f32 %v831, %v1079
        %v1081 = vpop.f32.mrf.mxu0
        %v1082 = vand.u32 %v189, 4294901760
        %v1083 = vsub.f32 %v189, %v1082
        %1084 = vmatprep.mubr.f32.mxu0 %v1083
        %v1085 = vand.u32 %v188, 4294901760
        %v1086 = vsub.f32 %v188, %v1085
        %1087 = vmatmul.mubr.f32.gmra.mxu0 %v1086
        %v1088 = vpop.f32.mrf.mxu0
        %v1089 = vadd.f32 %v838, %v1088
        %v1090 = vpop.f32.mrf.mxu0
        %v1091 = vand.u32 %v191, 4294901760
        %v1092 = vsub.f32 %v191, %v1091
        %1093 = vmatprep.mubr.f32.mxu0 %v1092
        %v1094 = vand.u32 %v190, 4294901760
        %v1095 = vsub.f32 %v190, %v1094
        %1096 = vmatmul.mubr.f32.gmra.mxu0 %v1095
        %v1097 = vpop.f32.mrf.mxu0
        %v1098 = vadd.f32 %v845, %v1097
        %v1099 = vpop.f32.mrf.mxu0
        %v1100 = vand.u32 %v193, 4294901760
        %v1101 = vsub.f32 %v193, %v1100
        %1102 = vmatprep.mubr.f32.mxu0 %v1101
        %v1103 = vand.u32 %v192, 4294901760
        %v1104 = vsub.f32 %v192, %v1103
        %1105 = vmatmul.mubr.f32.gmra.mxu0 %v1104
        %v1106 = vpop.f32.mrf.mxu0
        %v1107 = vadd.f32 %v852, %v1106
        %v1108 = vpop.f32.mrf.mxu0
        %v1109 = vand.u32 %v195, 4294901760
        %v1110 = vsub.f32 %v195, %v1109
        %1111 = vmatprep.mubr.f32.mxu0 %v1110
        %v1112 = vand.u32 %v194, 4294901760
        %v1113 = vsub.f32 %v194, %v1112
        %1114 = vmatmul.mubr.f32.gmra.mxu0 %v1113
        %v1115 = vpop.f32.mrf.mxu0
        %v1116 = vadd.f32 %v859, %v1115
        %v1117 = vpop.f32.mrf.mxu0
        %v1118 = vand.u32 %v197, 4294901760
        %v1119 = vsub.f32 %v197, %v1118
        %1120 = vmatprep.mubr.f32.mxu0 %v1119
        %v1121 = vand.u32 %v196, 4294901760
        %v1122 = vsub.f32 %v196, %v1121
        %1123 = vmatmul.mubr.f32.gmra.mxu0 %v1122
        %v1124 = vpop.f32.mrf.mxu0
        %v1125 = vadd.f32 %v866, %v1124
        %v1126 = vpop.f32.mrf.mxu0
        %v1127 = vand.u32 %v199, 4294901760
        %v1128 = vsub.f32 %v199, %v1127
        %1129 = vmatprep.mubr.f32.mxu0 %v1128
        %v1130 = vand.u32 %v198, 4294901760
        %v1131 = vsub.f32 %v198, %v1130
        %1132 = vmatmul.mubr.f32.gmra.mxu0 %v1131
        %v1133 = vpop.f32.mrf.mxu0
        %v1134 = vadd.f32 %v873, %v1133
        %v1135 = vpop.f32.mrf.mxu0
        %v1136 = vand.u32 %v201, 4294901760
        %v1137 = vsub.f32 %v201, %v1136
        %1138 = vmatprep.mubr.f32.mxu0 %v1137
        %v1139 = vand.u32 %v200, 4294901760
        %v1140 = vsub.f32 %v200, %v1139
        %1141 = vmatmul.mubr.f32.gmra.mxu0 %v1140
        %v1142 = vpop.f32.mrf.mxu0
        %v1143 = vadd.f32 %v880, %v1142
        %v1144 = vpop.f32.mrf.mxu0
        %v1145 = vand.u32 %v203, 4294901760
        %v1146 = vsub.f32 %v203, %v1145
        %1147 = vmatprep.mubr.f32.mxu0 %v1146
        %v1148 = vand.u32 %v202, 4294901760
        %v1149 = vsub.f32 %v202, %v1148
        %1150 = vmatmul.mubr.f32.gmra.mxu0 %v1149
        %v1151 = vpop.f32.mrf.mxu0
        %v1152 = vadd.f32 %v887, %v1151
        %v1153 = vpop.f32.mrf.mxu0
        %v1154 = vand.u32 %v205, 4294901760
        %v1155 = vsub.f32 %v205, %v1154
        %1156 = vmatprep.mubr.f32.mxu0 %v1155
        %v1157 = vand.u32 %v204, 4294901760
        %v1158 = vsub.f32 %v204, %v1157
        %1159 = vmatmul.mubr.f32.gmra.mxu0 %v1158
        %v1160 = vpop.f32.mrf.mxu0
        %v1161 = vadd.f32 %v894, %v1160
        %v1162 = vpop.f32.mrf.mxu0
        %v1163 = vand.u32 %v207, 4294901760
        %v1164 = vsub.f32 %v207, %v1163
        %1165 = vmatprep.mubr.f32.mxu0 %v1164
        %v1166 = vand.u32 %v206, 4294901760
        %v1167 = vsub.f32 %v206, %v1166
        %1168 = vmatmul.mubr.f32.gmra.mxu0 %v1167
        %v1169 = vpop.f32.mrf.mxu0
        %v1170 = vadd.f32 %v901, %v1169
        %v1171 = vpop.f32.mrf.mxu0
        %v1172 = vand.u32 %v209, 4294901760
        %v1173 = vsub.f32 %v209, %v1172
        %1174 = vmatprep.mubr.f32.mxu0 %v1173
        %v1175 = vand.u32 %v208, 4294901760
        %v1176 = vsub.f32 %v208, %v1175
        %1177 = vmatmul.mubr.f32.gmra.mxu0 %v1176
        %v1178 = vpop.f32.mrf.mxu0
        %v1179 = vadd.f32 %v908, %v1178
        %v1180 = vpop.f32.mrf.mxu0
        %v1181 = vand.u32 %v211, 4294901760
        %v1182 = vsub.f32 %v211, %v1181
        %1183 = vmatprep.mubr.f32.mxu0 %v1182
        %v1184 = vand.u32 %v210, 4294901760
        %v1185 = vsub.f32 %v210, %v1184
        %1186 = vmatmul.mubr.f32.gmra.mxu0 %v1185
        %v1187 = vpop.f32.mrf.mxu0
        %v1188 = vadd.f32 %v915, %v1187
        %v1189 = vpop.f32.mrf.mxu0
        %1190 = vdwg.mxu0
        %1191 = vmatprep.subr.mxu0 0.0
        %v1192 = vand.u32 %v227, 4294901760
        %1193 = vmatpush1.msra.mxu0 %v1192
        %1194 = vmatprep.subr.mxu0 0.0
        %v1195 = vand.u32 %v226, 4294901760
        %1196 = vmatpush1.msra.mxu0 %v1195
        %1197 = vmatprep.subr.mxu0 0.0
        %v1198 = vand.u32 %v225, 4294901760
        %1199 = vmatpush1.msra.mxu0 %v1198
        %1200 = vmatprep.subr.mxu0 0.0
        %v1201 = vand.u32 %v224, 4294901760
        %1202 = vmatpush1.msra.mxu0 %v1201
        %1203 = vmatprep.subr.mxu0 0.0
        %v1204 = vand.u32 %v223, 4294901760
        %1205 = vmatpush1.msra.mxu0 %v1204
        %1206 = vmatprep.subr.mxu0 0.0
        %v1207 = vand.u32 %v222, 4294901760
        %1208 = vmatpush1.msra.mxu0 %v1207
        %1209 = vmatprep.subr.mxu0 0.0
        %v1210 = vand.u32 %v221, 4294901760
        %1211 = vmatpush1.msra.mxu0 %v1210
        %1212 = vmatprep.subr.mxu0 0.0
        %v1213 = vand.u32 %v220, 4294901760
        %1214 = vmatpush1.msra.mxu0 %v1213
        %1215 = vmatprep.subr.mxu0 0.0
        %v1216 = vand.u32 %v219, 4294901760
        %1217 = vmatpush1.msra.mxu0 %v1216
        %1218 = vmatprep.subr.mxu0 0.0
        %v1219 = vand.u32 %v218, 4294901760
        %1220 = vmatpush1.msra.mxu0 %v1219
        %1221 = vmatprep.subr.mxu0 0.0
        %v1222 = vand.u32 %v217, 4294901760
        %1223 = vmatpush1.msra.mxu0 %v1222
        %1224 = vmatprep.subr.mxu0 0.0
        %v1225 = vand.u32 %v216, 4294901760
        %1226 = vmatpush1.msra.mxu0 %v1225
        %1227 = vmatprep.subr.mxu0 0.0
        %v1228 = vand.u32 %v215, 4294901760
        %1229 = vmatpush1.msra.mxu0 %v1228
        %1230 = vmatprep.subr.mxu0 0.0
        %v1231 = vand.u32 %v214, 4294901760
        %1232 = vmatpush1.msra.mxu0 %v1231
        %1233 = vmatprep.subr.mxu0 0.0
        %v1234 = vand.u32 %v213, 4294901760
        %1235 = vmatpush1.msra.mxu0 %v1234
        %1236 = vmatprep.subr.mxu0 0.0
        %v1237 = vand.u32 %v212, 4294901760
        %1238 = vmatpush1.msra.mxu0 %v1237
        %1239 = vmatprep.subr.mxu0 0.0
        %v1240 = vand.u32 %v243, 4294901760
        %1241 = vmatpush2.msra.mxu0 %v1240
        %1242 = vmatprep.subr.mxu0 0.0
        %v1243 = vand.u32 %v242, 4294901760
        %1244 = vmatpush2.msra.mxu0 %v1243
        %1245 = vmatprep.subr.mxu0 0.0
        %v1246 = vand.u32 %v241, 4294901760
        %1247 = vmatpush2.msra.mxu0 %v1246
        %1248 = vmatprep.subr.mxu0 0.0
        %v1249 = vand.u32 %v240, 4294901760
        %1250 = vmatpush2.msra.mxu0 %v1249
        %1251 = vmatprep.subr.mxu0 0.0
        %v1252 = vand.u32 %v239, 4294901760
        %1253 = vmatpush2.msra.mxu0 %v1252
        %1254 = vmatprep.subr.mxu0 0.0
        %v1255 = vand.u32 %v238, 4294901760
        %1256 = vmatpush2.msra.mxu0 %v1255
        %1257 = vmatprep.subr.mxu0 0.0
        %v1258 = vand.u32 %v237, 4294901760
        %1259 = vmatpush2.msra.mxu0 %v1258
        %1260 = vmatprep.subr.mxu0 0.0
        %v1261 = vand.u32 %v236, 4294901760
        %1262 = vmatpush2.msra.mxu0 %v1261
        %1263 = vmatprep.subr.mxu0 0.0
        %v1264 = vand.u32 %v235, 4294901760
        %1265 = vmatpush2.msra.mxu0 %v1264
        %1266 = vmatprep.subr.mxu0 0.0
        %v1267 = vand.u32 %v234, 4294901760
        %1268 = vmatpush2.msra.mxu0 %v1267
        %1269 = vmatprep.subr.mxu0 0.0
        %v1270 = vand.u32 %v233, 4294901760
        %1271 = vmatpush2.msra.mxu0 %v1270
        %1272 = vmatprep.subr.mxu0 0.0
        %v1273 = vand.u32 %v232, 4294901760
        %1274 = vmatpush2.msra.mxu0 %v1273
        %1275 = vmatprep.subr.mxu0 0.0
        %v1276 = vand.u32 %v231, 4294901760
        %1277 = vmatpush2.msra.mxu0 %v1276
        %1278 = vmatprep.subr.mxu0 0.0
        %v1279 = vand.u32 %v230, 4294901760
        %1280 = vmatpush2.msra.mxu0 %v1279
        %1281 = vmatprep.subr.mxu0 0.0
        %v1282 = vand.u32 %v229, 4294901760
        %1283 = vmatpush2.msra.mxu0 %v1282
        %1284 = vmatprep.subr.mxu0 0.0
        %v1285 = vand.u32 %v228, 4294901760
        %1286 = vmatpush2.msra.mxu0 %v1285
        %v1287 = vand.u32 %v181, 4294901760
        %v1288 = vsub.f32 %v181, %v1287
        %v1289 = vand.u32 %v1288, 4294901760
        %1290 = vmatprep.mubr.f32.mxu0 %v1289
        %v1291 = vand.u32 %v180, 4294901760
        %v1292 = vsub.f32 %v180, %v1291
        %v1293 = vand.u32 %v1292, 4294901760
        %1294 = vmatmul.mubr.f32.gmra.mxu0 %v1293
        %v1295 = vpop.f32.mrf.mxu0
        %v1296 = vadd.f32 %v1053, %v1295
        %v1297 = vpop.f32.mrf.mxu0
        %v1298 = vand.u32 %v183, 4294901760
        %v1299 = vsub.f32 %v183, %v1298
        %v1300 = vand.u32 %v1299, 4294901760
        %1301 = vmatprep.mubr.f32.mxu0 %v1300
        %v1302 = vand.u32 %v182, 4294901760
        %v1303 = vsub.f32 %v182, %v1302
        %v1304 = vand.u32 %v1303, 4294901760
        %1305 = vmatmul.mubr.f32.gmra.mxu0 %v1304
        %v1306 = vpop.f32.mrf.mxu0
        %v1307 = vadd.f32 %v1062, %v1306
        %v1308 = vpop.f32.mrf.mxu0
        %v1309 = vand.u32 %v185, 4294901760
        %v1310 = vsub.f32 %v185, %v1309
        %v1311 = vand.u32 %v1310, 4294901760
        %1312 = vmatprep.mubr.f32.mxu0 %v1311
        %v1313 = vand.u32 %v184, 4294901760
        %v1314 = vsub.f32 %v184, %v1313
        %v1315 = vand.u32 %v1314, 4294901760
        %1316 = vmatmul.mubr.f32.gmra.mxu0 %v1315
        %v1317 = vpop.f32.mrf.mxu0
        %v1318 = vadd.f32 %v1071, %v1317
        %v1319 = vpop.f32.mrf.mxu0
        %v1320 = vand.u32 %v187, 4294901760
        %v1321 = vsub.f32 %v187, %v1320
        %v1322 = vand.u32 %v1321, 4294901760
        %1323 = vmatprep.mubr.f32.mxu0 %v1322
        %v1324 = vand.u32 %v186, 4294901760
        %v1325 = vsub.f32 %v186, %v1324
        %v1326 = vand.u32 %v1325, 4294901760
        %1327 = vmatmul.mubr.f32.gmra.mxu0 %v1326
        %v1328 = vpop.f32.mrf.mxu0
        %v1329 = vadd.f32 %v1080, %v1328
        %v1330 = vpop.f32.mrf.mxu0
        %v1331 = vand.u32 %v189, 4294901760
        %v1332 = vsub.f32 %v189, %v1331
        %v1333 = vand.u32 %v1332, 4294901760
        %1334 = vmatprep.mubr.f32.mxu0 %v1333
        %v1335 = vand.u32 %v188, 4294901760
        %v1336 = vsub.f32 %v188, %v1335
        %v1337 = vand.u32 %v1336, 4294901760
        %1338 = vmatmul.mubr.f32.gmra.mxu0 %v1337
        %v1339 = vpop.f32.mrf.mxu0
        %v1340 = vadd.f32 %v1089, %v1339
        %v1341 = vpop.f32.mrf.mxu0
        %v1342 = vand.u32 %v191, 4294901760
        %v1343 = vsub.f32 %v191, %v1342
        %v1344 = vand.u32 %v1343, 4294901760
        %1345 = vmatprep.mubr.f32.mxu0 %v1344
        %v1346 = vand.u32 %v190, 4294901760
        %v1347 = vsub.f32 %v190, %v1346
        %v1348 = vand.u32 %v1347, 4294901760
        %1349 = vmatmul.mubr.f32.gmra.mxu0 %v1348
        %v1350 = vpop.f32.mrf.mxu0
        %v1351 = vadd.f32 %v1098, %v1350
        %v1352 = vpop.f32.mrf.mxu0
        %v1353 = vand.u32 %v193, 4294901760
        %v1354 = vsub.f32 %v193, %v1353
        %v1355 = vand.u32 %v1354, 4294901760
        %1356 = vmatprep.mubr.f32.mxu0 %v1355
        %v1357 = vand.u32 %v192, 4294901760
        %v1358 = vsub.f32 %v192, %v1357
        %v1359 = vand.u32 %v1358, 4294901760
        %1360 = vmatmul.mubr.f32.gmra.mxu0 %v1359
        %v1361 = vpop.f32.mrf.mxu0
        %v1362 = vadd.f32 %v1107, %v1361
        %v1363 = vpop.f32.mrf.mxu0
        %v1364 = vand.u32 %v195, 4294901760
        %v1365 = vsub.f32 %v195, %v1364
        %v1366 = vand.u32 %v1365, 4294901760
        %1367 = vmatprep.mubr.f32.mxu0 %v1366
        %v1368 = vand.u32 %v194, 4294901760
        %v1369 = vsub.f32 %v194, %v1368
        %v1370 = vand.u32 %v1369, 4294901760
        %1371 = vmatmul.mubr.f32.gmra.mxu0 %v1370
        %v1372 = vpop.f32.mrf.mxu0
        %v1373 = vadd.f32 %v1116, %v1372
        %v1374 = vpop.f32.mrf.mxu0
        %v1375 = vand.u32 %v197, 4294901760
        %v1376 = vsub.f32 %v197, %v1375
        %v1377 = vand.u32 %v1376, 4294901760
        %1378 = vmatprep.mubr.f32.mxu0 %v1377
        %v1379 = vand.u32 %v196, 4294901760
        %v1380 = vsub.f32 %v196, %v1379
        %v1381 = vand.u32 %v1380, 4294901760
        %1382 = vmatmul.mubr.f32.gmra.mxu0 %v1381
        %v1383 = vpop.f32.mrf.mxu0
        %v1384 = vadd.f32 %v1125, %v1383
        %v1385 = vpop.f32.mrf.mxu0
        %v1386 = vand.u32 %v199, 4294901760
        %v1387 = vsub.f32 %v199, %v1386
        %v1388 = vand.u32 %v1387, 4294901760
        %1389 = vmatprep.mubr.f32.mxu0 %v1388
        %v1390 = vand.u32 %v198, 4294901760
        %v1391 = vsub.f32 %v198, %v1390
        %v1392 = vand.u32 %v1391, 4294901760
        %1393 = vmatmul.mubr.f32.gmra.mxu0 %v1392
        %v1394 = vpop.f32.mrf.mxu0
        %v1395 = vadd.f32 %v1134, %v1394
        %v1396 = vpop.f32.mrf.mxu0
        %v1397 = vand.u32 %v201, 4294901760
        %v1398 = vsub.f32 %v201, %v1397
        %v1399 = vand.u32 %v1398, 4294901760
        %1400 = vmatprep.mubr.f32.mxu0 %v1399
        %v1401 = vand.u32 %v200, 4294901760
        %v1402 = vsub.f32 %v200, %v1401
        %v1403 = vand.u32 %v1402, 4294901760
        %1404 = vmatmul.mubr.f32.gmra.mxu0 %v1403
        %v1405 = vpop.f32.mrf.mxu0
        %v1406 = vadd.f32 %v1143, %v1405
        %v1407 = vpop.f32.mrf.mxu0
        %v1408 = vand.u32 %v203, 4294901760
        %v1409 = vsub.f32 %v203, %v1408
        %v1410 = vand.u32 %v1409, 4294901760
        %1411 = vmatprep.mubr.f32.mxu0 %v1410
        %v1412 = vand.u32 %v202, 4294901760
        %v1413 = vsub.f32 %v202, %v1412
        %v1414 = vand.u32 %v1413, 4294901760
        %1415 = vmatmul.mubr.f32.gmra.mxu0 %v1414
        %v1416 = vpop.f32.mrf.mxu0
        %v1417 = vadd.f32 %v1152, %v1416
        %v1418 = vpop.f32.mrf.mxu0
        %v1419 = vand.u32 %v205, 4294901760
        %v1420 = vsub.f32 %v205, %v1419
        %v1421 = vand.u32 %v1420, 4294901760
        %1422 = vmatprep.mubr.f32.mxu0 %v1421
        %v1423 = vand.u32 %v204, 4294901760
        %v1424 = vsub.f32 %v204, %v1423
        %v1425 = vand.u32 %v1424, 4294901760
        %1426 = vmatmul.mubr.f32.gmra.mxu0 %v1425
        %v1427 = vpop.f32.mrf.mxu0
        %v1428 = vadd.f32 %v1161, %v1427
        %v1429 = vpop.f32.mrf.mxu0
        %v1430 = vand.u32 %v207, 4294901760
        %v1431 = vsub.f32 %v207, %v1430
        %v1432 = vand.u32 %v1431, 4294901760
        %1433 = vmatprep.mubr.f32.mxu0 %v1432
        %v1434 = vand.u32 %v206, 4294901760
        %v1435 = vsub.f32 %v206, %v1434
        %v1436 = vand.u32 %v1435, 4294901760
        %1437 = vmatmul.mubr.f32.gmra.mxu0 %v1436
        %v1438 = vpop.f32.mrf.mxu0
        %v1439 = vadd.f32 %v1170, %v1438
        %v1440 = vpop.f32.mrf.mxu0
        %v1441 = vand.u32 %v209, 4294901760
        %v1442 = vsub.f32 %v209, %v1441
        %v1443 = vand.u32 %v1442, 4294901760
        %1444 = vmatprep.mubr.f32.mxu0 %v1443
        %v1445 = vand.u32 %v208, 4294901760
        %v1446 = vsub.f32 %v208, %v1445
        %v1447 = vand.u32 %v1446, 4294901760
        %1448 = vmatmul.mubr.f32.gmra.mxu0 %v1447
        %v1449 = vpop.f32.mrf.mxu0
        %v1450 = vadd.f32 %v1179, %v1449
        %v1451 = vpop.f32.mrf.mxu0
        %v1452 = vand.u32 %v211, 4294901760
        %v1453 = vsub.f32 %v211, %v1452
        %v1454 = vand.u32 %v1453, 4294901760
        %1455 = vmatprep.mubr.f32.mxu0 %v1454
        %v1456 = vand.u32 %v210, 4294901760
        %v1457 = vsub.f32 %v210, %v1456
        %v1458 = vand.u32 %v1457, 4294901760
        %1459 = vmatmul.mubr.f32.gmra.mxu0 %v1458
        %v1460 = vpop.f32.mrf.mxu0
        %v1461 = vadd.f32 %v1188, %v1460
        %v1462 = vpop.f32.mrf.mxu0
        %1463 = vdwg.mxu0
        %1464 = vmatprep.subr.mxu0 0.0
        %v1465 = vand.u32 %v227, 4294901760
        %v1466 = vsub.f32 %v227, %v1465
        %v1467 = vand.u32 %v1466, 4294901760
        %1468 = vmatpush1.msra.mxu0 %v1467
        %1469 = vmatprep.subr.mxu0 0.0
        %v1470 = vand.u32 %v226, 4294901760
        %v1471 = vsub.f32 %v226, %v1470
        %v1472 = vand.u32 %v1471, 4294901760
        %1473 = vmatpush1.msra.mxu0 %v1472
        %1474 = vmatprep.subr.mxu0 0.0
        %v1475 = vand.u32 %v225, 4294901760
        %v1476 = vsub.f32 %v225, %v1475
        %v1477 = vand.u32 %v1476, 4294901760
        %1478 = vmatpush1.msra.mxu0 %v1477
        %1479 = vmatprep.subr.mxu0 0.0
        %v1480 = vand.u32 %v224, 4294901760
        %v1481 = vsub.f32 %v224, %v1480
        %v1482 = vand.u32 %v1481, 4294901760
        %1483 = vmatpush1.msra.mxu0 %v1482
        %1484 = vmatprep.subr.mxu0 0.0
        %v1485 = vand.u32 %v223, 4294901760
        %v1486 = vsub.f32 %v223, %v1485
        %v1487 = vand.u32 %v1486, 4294901760
        %1488 = vmatpush1.msra.mxu0 %v1487
        %1489 = vmatprep.subr.mxu0 0.0
        %v1490 = vand.u32 %v222, 4294901760
        %v1491 = vsub.f32 %v222, %v1490
        %v1492 = vand.u32 %v1491, 4294901760
        %1493 = vmatpush1.msra.mxu0 %v1492
        %1494 = vmatprep.subr.mxu0 0.0
        %v1495 = vand.u32 %v221, 4294901760
        %v1496 = vsub.f32 %v221, %v1495
        %v1497 = vand.u32 %v1496, 4294901760
        %1498 = vmatpush1.msra.mxu0 %v1497
        %1499 = vmatprep.subr.mxu0 0.0
        %v1500 = vand.u32 %v220, 4294901760
        %v1501 = vsub.f32 %v220, %v1500
        %v1502 = vand.u32 %v1501, 4294901760
        %1503 = vmatpush1.msra.mxu0 %v1502
        %1504 = vmatprep.subr.mxu0 0.0
        %v1505 = vand.u32 %v219, 4294901760
        %v1506 = vsub.f32 %v219, %v1505
        %v1507 = vand.u32 %v1506, 4294901760
        %1508 = vmatpush1.msra.mxu0 %v1507
        %1509 = vmatprep.subr.mxu0 0.0
        %v1510 = vand.u32 %v218, 4294901760
        %v1511 = vsub.f32 %v218, %v1510
        %v1512 = vand.u32 %v1511, 4294901760
        %1513 = vmatpush1.msra.mxu0 %v1512
        %1514 = vmatprep.subr.mxu0 0.0
        %v1515 = vand.u32 %v217, 4294901760
        %v1516 = vsub.f32 %v217, %v1515
        %v1517 = vand.u32 %v1516, 4294901760
        %1518 = vmatpush1.msra.mxu0 %v1517
        %1519 = vmatprep.subr.mxu0 0.0
        %v1520 = vand.u32 %v216, 4294901760
        %v1521 = vsub.f32 %v216, %v1520
        %v1522 = vand.u32 %v1521, 4294901760
        %1523 = vmatpush1.msra.mxu0 %v1522
        %1524 = vmatprep.subr.mxu0 0.0
        %v1525 = vand.u32 %v215, 4294901760
        %v1526 = vsub.f32 %v215, %v1525
        %v1527 = vand.u32 %v1526, 4294901760
        %1528 = vmatpush1.msra.mxu0 %v1527
        %1529 = vmatprep.subr.mxu0 0.0
        %v1530 = vand.u32 %v214, 4294901760
        %v1531 = vsub.f32 %v214, %v1530
        %v1532 = vand.u32 %v1531, 4294901760
        %1533 = vmatpush1.msra.mxu0 %v1532
        %1534 = vmatprep.subr.mxu0 0.0
        %v1535 = vand.u32 %v213, 4294901760
        %v1536 = vsub.f32 %v213, %v1535
        %v1537 = vand.u32 %v1536, 4294901760
        %1538 = vmatpush1.msra.mxu0 %v1537
        %1539 = vmatprep.subr.mxu0 0.0
        %v1540 = vand.u32 %v212, 4294901760
        %v1541 = vsub.f32 %v212, %v1540
        %v1542 = vand.u32 %v1541, 4294901760
        %1543 = vmatpush1.msra.mxu0 %v1542
        %1544 = vmatprep.subr.mxu0 0.0
        %v1545 = vand.u32 %v243, 4294901760
        %v1546 = vsub.f32 %v243, %v1545
        %v1547 = vand.u32 %v1546, 4294901760
        %1548 = vmatpush2.msra.mxu0 %v1547
        %1549 = vmatprep.subr.mxu0 0.0
        %v1550 = vand.u32 %v242, 4294901760
        %v1551 = vsub.f32 %v242, %v1550
        %v1552 = vand.u32 %v1551, 4294901760
        %1553 = vmatpush2.msra.mxu0 %v1552
        %1554 = vmatprep.subr.mxu0 0.0
        %v1555 = vand.u32 %v241, 4294901760
        %v1556 = vsub.f32 %v241, %v1555
        %v1557 = vand.u32 %v1556, 4294901760
        %1558 = vmatpush2.msra.mxu0 %v1557
        %1559 = vmatprep.subr.mxu0 0.0
        %v1560 = vand.u32 %v240, 4294901760
        %v1561 = vsub.f32 %v240, %v1560
        %v1562 = vand.u32 %v1561, 4294901760
        %1563 = vmatpush2.msra.mxu0 %v1562
        %1564 = vmatprep.subr.mxu0 0.0
        %v1565 = vand.u32 %v239, 4294901760
        %v1566 = vsub.f32 %v239, %v1565
        %v1567 = vand.u32 %v1566, 4294901760
        %1568 = vmatpush2.msra.mxu0 %v1567
        %1569 = vmatprep.subr.mxu0 0.0
        %v1570 = vand.u32 %v238, 4294901760
        %v1571 = vsub.f32 %v238, %v1570
        %v1572 = vand.u32 %v1571, 4294901760
        %1573 = vmatpush2.msra.mxu0 %v1572
        %1574 = vmatprep.subr.mxu0 0.0
        %v1575 = vand.u32 %v237, 4294901760
        %v1576 = vsub.f32 %v237, %v1575
        %v1577 = vand.u32 %v1576, 4294901760
        %1578 = vmatpush2.msra.mxu0 %v1577
        %1579 = vmatprep.subr.mxu0 0.0
        %v1580 = vand.u32 %v236, 4294901760
        %v1581 = vsub.f32 %v236, %v1580
        %v1582 = vand.u32 %v1581, 4294901760
        %1583 = vmatpush2.msra.mxu0 %v1582
        %1584 = vmatprep.subr.mxu0 0.0
        %v1585 = vand.u32 %v235, 4294901760
        %v1586 = vsub.f32 %v235, %v1585
        %v1587 = vand.u32 %v1586, 4294901760
        %1588 = vmatpush2.msra.mxu0 %v1587
        %1589 = vmatprep.subr.mxu0 0.0
        %v1590 = vand.u32 %v234, 4294901760
        %v1591 = vsub.f32 %v234, %v1590
        %v1592 = vand.u32 %v1591, 4294901760
        %1593 = vmatpush2.msra.mxu0 %v1592
        %1594 = vmatprep.subr.mxu0 0.0
        %v1595 = vand.u32 %v233, 4294901760
        %v1596 = vsub.f32 %v233, %v1595
        %v1597 = vand.u32 %v1596, 4294901760
        %1598 = vmatpush2.msra.mxu0 %v1597
        %1599 = vmatprep.subr.mxu0 0.0
        %v1600 = vand.u32 %v232, 4294901760
        %v1601 = vsub.f32 %v232, %v1600
        %v1602 = vand.u32 %v1601, 4294901760
        %1603 = vmatpush2.msra.mxu0 %v1602
        %1604 = vmatprep.subr.mxu0 0.0
        %v1605 = vand.u32 %v231, 4294901760
        %v1606 = vsub.f32 %v231, %v1605
        %v1607 = vand.u32 %v1606, 4294901760
        %1608 = vmatpush2.msra.mxu0 %v1607
        %1609 = vmatprep.subr.mxu0 0.0
        %v1610 = vand.u32 %v230, 4294901760
        %v1611 = vsub.f32 %v230, %v1610
        %v1612 = vand.u32 %v1611, 4294901760
        %1613 = vmatpush2.msra.mxu0 %v1612
        %1614 = vmatprep.subr.mxu0 0.0
        %v1615 = vand.u32 %v229, 4294901760
        %v1616 = vsub.f32 %v229, %v1615
        %v1617 = vand.u32 %v1616, 4294901760
        %1618 = vmatpush2.msra.mxu0 %v1617
        %1619 = vmatprep.subr.mxu0 0.0
        %v1620 = vand.u32 %v228, 4294901760
        %v1621 = vsub.f32 %v228, %v1620
        %v1622 = vand.u32 %v1621, 4294901760
        %1623 = vmatpush2.msra.mxu0 %v1622
        %v1624 = vand.u32 %v181, 4294901760
        %1625 = vmatprep.mubr.f32.mxu0 %v1624
        %v1626 = vand.u32 %v180, 4294901760
        %1627 = vmatmul.mubr.f32.gmra.mxu0 %v1626
        %v1628 = vpop.f32.mrf.mxu0
        %v1629 = vadd.f32 %v1296, %v1628
        %v1630 = vpop.f32.mrf.mxu0
        %v1631 = vand.u32 %v183, 4294901760
        %1632 = vmatprep.mubr.f32.mxu0 %v1631
        %v1633 = vand.u32 %v182, 4294901760
        %1634 = vmatmul.mubr.f32.gmra.mxu0 %v1633
        %v1635 = vpop.f32.mrf.mxu0
        %v1636 = vadd.f32 %v1307, %v1635
        %v1637 = vpop.f32.mrf.mxu0
        %v1638 = vand.u32 %v185, 4294901760
        %1639 = vmatprep.mubr.f32.mxu0 %v1638
        %v1640 = vand.u32 %v184, 4294901760
        %1641 = vmatmul.mubr.f32.gmra.mxu0 %v1640
        %v1642 = vpop.f32.mrf.mxu0
        %v1643 = vadd.f32 %v1318, %v1642
        %v1644 = vpop.f32.mrf.mxu0
        %v1645 = vand.u32 %v187, 4294901760
        %1646 = vmatprep.mubr.f32.mxu0 %v1645
        %v1647 = vand.u32 %v186, 4294901760
        %1648 = vmatmul.mubr.f32.gmra.mxu0 %v1647
        %v1649 = vpop.f32.mrf.mxu0
        %v1650 = vadd.f32 %v1329, %v1649
        %v1651 = vpop.f32.mrf.mxu0
        %v1652 = vand.u32 %v189, 4294901760
        %1653 = vmatprep.mubr.f32.mxu0 %v1652
        %v1654 = vand.u32 %v188, 4294901760
        %1655 = vmatmul.mubr.f32.gmra.mxu0 %v1654
        %v1656 = vpop.f32.mrf.mxu0
        %v1657 = vadd.f32 %v1340, %v1656
        %v1658 = vpop.f32.mrf.mxu0
        %v1659 = vand.u32 %v191, 4294901760
        %1660 = vmatprep.mubr.f32.mxu0 %v1659
        %v1661 = vand.u32 %v190, 4294901760
        %1662 = vmatmul.mubr.f32.gmra.mxu0 %v1661
        %v1663 = vpop.f32.mrf.mxu0
        %v1664 = vadd.f32 %v1351, %v1663
        %v1665 = vpop.f32.mrf.mxu0
        %v1666 = vand.u32 %v193, 4294901760
        %1667 = vmatprep.mubr.f32.mxu0 %v1666
        %v1668 = vand.u32 %v192, 4294901760
        %1669 = vmatmul.mubr.f32.gmra.mxu0 %v1668
        %v1670 = vpop.f32.mrf.mxu0
        %v1671 = vadd.f32 %v1362, %v1670
        %v1672 = vpop.f32.mrf.mxu0
        %v1673 = vand.u32 %v195, 4294901760
        %1674 = vmatprep.mubr.f32.mxu0 %v1673
        %v1675 = vand.u32 %v194, 4294901760
        %1676 = vmatmul.mubr.f32.gmra.mxu0 %v1675
        %v1677 = vpop.f32.mrf.mxu0
        %v1678 = vadd.f32 %v1373, %v1677
        %v1679 = vpop.f32.mrf.mxu0
        %v1680 = vand.u32 %v197, 4294901760
        %1681 = vmatprep.mubr.f32.mxu0 %v1680
        %v1682 = vand.u32 %v196, 4294901760
        %1683 = vmatmul.mubr.f32.gmra.mxu0 %v1682
        %v1684 = vpop.f32.mrf.mxu0
        %v1685 = vadd.f32 %v1384, %v1684
        %v1686 = vpop.f32.mrf.mxu0
        %v1687 = vand.u32 %v199, 4294901760
        %1688 = vmatprep.mubr.f32.mxu0 %v1687
        %v1689 = vand.u32 %v198, 4294901760
        %1690 = vmatmul.mubr.f32.gmra.mxu0 %v1689
        %v1691 = vpop.f32.mrf.mxu0
        %v1692 = vadd.f32 %v1395, %v1691
        %v1693 = vpop.f32.mrf.mxu0
        %v1694 = vand.u32 %v201, 4294901760
        %1695 = vmatprep.mubr.f32.mxu0 %v1694
        %v1696 = vand.u32 %v200, 4294901760
        %1697 = vmatmul.mubr.f32.gmra.mxu0 %v1696
        %v1698 = vpop.f32.mrf.mxu0
        %v1699 = vadd.f32 %v1406, %v1698
        %v1700 = vpop.f32.mrf.mxu0
        %v1701 = vand.u32 %v203, 4294901760
        %1702 = vmatprep.mubr.f32.mxu0 %v1701
        %v1703 = vand.u32 %v202, 4294901760
        %1704 = vmatmul.mubr.f32.gmra.mxu0 %v1703
        %v1705 = vpop.f32.mrf.mxu0
        %v1706 = vadd.f32 %v1417, %v1705
        %v1707 = vpop.f32.mrf.mxu0
        %v1708 = vand.u32 %v205, 4294901760
        %1709 = vmatprep.mubr.f32.mxu0 %v1708
        %v1710 = vand.u32 %v204, 4294901760
        %1711 = vmatmul.mubr.f32.gmra.mxu0 %v1710
        %v1712 = vpop.f32.mrf.mxu0
        %v1713 = vadd.f32 %v1428, %v1712
        %v1714 = vpop.f32.mrf.mxu0
        %v1715 = vand.u32 %v207, 4294901760
        %1716 = vmatprep.mubr.f32.mxu0 %v1715
        %v1717 = vand.u32 %v206, 4294901760
        %1718 = vmatmul.mubr.f32.gmra.mxu0 %v1717
        %v1719 = vpop.f32.mrf.mxu0
        %v1720 = vadd.f32 %v1439, %v1719
        %v1721 = vpop.f32.mrf.mxu0
        %v1722 = vand.u32 %v209, 4294901760
        %1723 = vmatprep.mubr.f32.mxu0 %v1722
        %v1724 = vand.u32 %v208, 4294901760
        %1725 = vmatmul.mubr.f32.gmra.mxu0 %v1724
        %v1726 = vpop.f32.mrf.mxu0
        %v1727 = vadd.f32 %v1450, %v1726
        %v1728 = vpop.f32.mrf.mxu0
        %v1729 = vand.u32 %v211, 4294901760
        %1730 = vmatprep.mubr.f32.mxu0 %v1729
        %v1731 = vand.u32 %v210, 4294901760
        %1732 = vmatmul.mubr.f32.gmra.mxu0 %v1731
        %v1733 = vpop.f32.mrf.mxu0
        %v1734 = vadd.f32 %v1461, %v1733
        %v1735 = vpop.f32.mrf.mxu0
        %1736 = vdwg.mxu0
        %1737 = vmatprep.subr.mxu0 0.0
        %v1738 = vand.u32 %v227, 4294901760
        %1739 = vmatpush1.msra.mxu0 %v1738
        %1740 = vmatprep.subr.mxu0 0.0
        %v1741 = vand.u32 %v226, 4294901760
        %1742 = vmatpush1.msra.mxu0 %v1741
        %1743 = vmatprep.subr.mxu0 0.0
        %v1744 = vand.u32 %v225, 4294901760
        %1745 = vmatpush1.msra.mxu0 %v1744
        %1746 = vmatprep.subr.mxu0 0.0
        %v1747 = vand.u32 %v224, 4294901760
        %1748 = vmatpush1.msra.mxu0 %v1747
        %1749 = vmatprep.subr.mxu0 0.0
        %v1750 = vand.u32 %v223, 4294901760
        %1751 = vmatpush1.msra.mxu0 %v1750
        %1752 = vmatprep.subr.mxu0 0.0
        %v1753 = vand.u32 %v222, 4294901760
        %1754 = vmatpush1.msra.mxu0 %v1753
        %1755 = vmatprep.subr.mxu0 0.0
        %v1756 = vand.u32 %v221, 4294901760
        %1757 = vmatpush1.msra.mxu0 %v1756
        %1758 = vmatprep.subr.mxu0 0.0
        %v1759 = vand.u32 %v220, 4294901760
        %1760 = vmatpush1.msra.mxu0 %v1759
        %1761 = vmatprep.subr.mxu0 0.0
        %v1762 = vand.u32 %v219, 4294901760
        %1763 = vmatpush1.msra.mxu0 %v1762
        %1764 = vmatprep.subr.mxu0 0.0
        %v1765 = vand.u32 %v218, 4294901760
        %1766 = vmatpush1.msra.mxu0 %v1765
        %1767 = vmatprep.subr.mxu0 0.0
        %v1768 = vand.u32 %v217, 4294901760
        %1769 = vmatpush1.msra.mxu0 %v1768
        %1770 = vmatprep.subr.mxu0 0.0
        %v1771 = vand.u32 %v216, 4294901760
        %1772 = vmatpush1.msra.mxu0 %v1771
        %1773 = vmatprep.subr.mxu0 0.0
        %v1774 = vand.u32 %v215, 4294901760
        %1775 = vmatpush1.msra.mxu0 %v1774
        %1776 = vmatprep.subr.mxu0 0.0
        %v1777 = vand.u32 %v214, 4294901760
        %1778 = vmatpush1.msra.mxu0 %v1777
        %1779 = vmatprep.subr.mxu0 0.0
        %v1780 = vand.u32 %v213, 4294901760
        %1781 = vmatpush1.msra.mxu0 %v1780
        %1782 = vmatprep.subr.mxu0 0.0
        %v1783 = vand.u32 %v212, 4294901760
        %1784 = vmatpush1.msra.mxu0 %v1783
        %1785 = vmatprep.subr.mxu0 0.0
        %v1786 = vand.u32 %v243, 4294901760
        %1787 = vmatpush2.msra.mxu0 %v1786
        %1788 = vmatprep.subr.mxu0 0.0
        %v1789 = vand.u32 %v242, 4294901760
        %1790 = vmatpush2.msra.mxu0 %v1789
        %1791 = vmatprep.subr.mxu0 0.0
        %v1792 = vand.u32 %v241, 4294901760
        %1793 = vmatpush2.msra.mxu0 %v1792
        %1794 = vmatprep.subr.mxu0 0.0
        %v1795 = vand.u32 %v240, 4294901760
        %1796 = vmatpush2.msra.mxu0 %v1795
        %1797 = vmatprep.subr.mxu0 0.0
        %v1798 = vand.u32 %v239, 4294901760
        %1799 = vmatpush2.msra.mxu0 %v1798
        %1800 = vmatprep.subr.mxu0 0.0
        %v1801 = vand.u32 %v238, 4294901760
        %1802 = vmatpush2.msra.mxu0 %v1801
        %1803 = vmatprep.subr.mxu0 0.0
        %v1804 = vand.u32 %v237, 4294901760
        %1805 = vmatpush2.msra.mxu0 %v1804
        %1806 = vmatprep.subr.mxu0 0.0
        %v1807 = vand.u32 %v236, 4294901760
        %1808 = vmatpush2.msra.mxu0 %v1807
        %1809 = vmatprep.subr.mxu0 0.0
        %v1810 = vand.u32 %v235, 4294901760
        %1811 = vmatpush2.msra.mxu0 %v1810
        %1812 = vmatprep.subr.mxu0 0.0
        %v1813 = vand.u32 %v234, 4294901760
        %1814 = vmatpush2.msra.mxu0 %v1813
        %1815 = vmatprep.subr.mxu0 0.0
        %v1816 = vand.u32 %v233, 4294901760
        %1817 = vmatpush2.msra.mxu0 %v1816
        %1818 = vmatprep.subr.mxu0 0.0
        %v1819 = vand.u32 %v232, 4294901760
        %1820 = vmatpush2.msra.mxu0 %v1819
        %1821 = vmatprep.subr.mxu0 0.0
        %v1822 = vand.u32 %v231, 4294901760
        %1823 = vmatpush2.msra.mxu0 %v1822
        %1824 = vmatprep.subr.mxu0 0.0
        %v1825 = vand.u32 %v230, 4294901760
        %1826 = vmatpush2.msra.mxu0 %v1825
        %1827 = vmatprep.subr.mxu0 0.0
        %v1828 = vand.u32 %v229, 4294901760
        %1829 = vmatpush2.msra.mxu0 %v1828
        %1830 = vmatprep.subr.mxu0 0.0
        %v1831 = vand.u32 %v228, 4294901760
        %1832 = vmatpush2.msra.mxu0 %v1831
        %v1833 = vand.u32 %v181, 4294901760
        %1834 = vmatprep.mubr.f32.mxu0 %v1833
        %v1835 = vand.u32 %v180, 4294901760
        %1836 = vmatmul.mubr.f32.gmra.mxu0 %v1835
        %v1837 = vpop.f32.mrf.mxu0
        %v1838 = vadd.f32 %v1629, %v1837
        %v1839 = vpop.f32.mrf.mxu0
        %v1840 = vand.u32 %v183, 4294901760
        %1841 = vmatprep.mubr.f32.mxu0 %v1840
        %v1842 = vand.u32 %v182, 4294901760
        %1843 = vmatmul.mubr.f32.gmra.mxu0 %v1842
        %v1844 = vpop.f32.mrf.mxu0
        %v1845 = vadd.f32 %v1636, %v1844
        %v1846 = vpop.f32.mrf.mxu0
        %v1847 = vand.u32 %v185, 4294901760
        %1848 = vmatprep.mubr.f32.mxu0 %v1847
        %v1849 = vand.u32 %v184, 4294901760
        %1850 = vmatmul.mubr.f32.gmra.mxu0 %v1849
        %v1851 = vpop.f32.mrf.mxu0
        %v1852 = vadd.f32 %v1643, %v1851
        %v1853 = vpop.f32.mrf.mxu0
        %v1854 = vand.u32 %v187, 4294901760
        %1855 = vmatprep.mubr.f32.mxu0 %v1854
        %v1856 = vand.u32 %v186, 4294901760
        %1857 = vmatmul.mubr.f32.gmra.mxu0 %v1856
        %v1858 = vpop.f32.mrf.mxu0
        %v1859 = vadd.f32 %v1650, %v1858
        %v1860 = vpop.f32.mrf.mxu0
        %v1861 = vand.u32 %v189, 4294901760
        %1862 = vmatprep.mubr.f32.mxu0 %v1861
        %v1863 = vand.u32 %v188, 4294901760
        %1864 = vmatmul.mubr.f32.gmra.mxu0 %v1863
        %v1865 = vpop.f32.mrf.mxu0
        %v1866 = vadd.f32 %v1657, %v1865
        %v1867 = vpop.f32.mrf.mxu0
        %v1868 = vand.u32 %v191, 4294901760
        %1869 = vmatprep.mubr.f32.mxu0 %v1868
        %v1870 = vand.u32 %v190, 4294901760
        %1871 = vmatmul.mubr.f32.gmra.mxu0 %v1870
        %v1872 = vpop.f32.mrf.mxu0
        %v1873 = vadd.f32 %v1664, %v1872
        %v1874 = vpop.f32.mrf.mxu0
        %v1875 = vand.u32 %v193, 4294901760
        %1876 = vmatprep.mubr.f32.mxu0 %v1875
        %v1877 = vand.u32 %v192, 4294901760
        %1878 = vmatmul.mubr.f32.gmra.mxu0 %v1877
        %v1879 = vpop.f32.mrf.mxu0
        %v1880 = vadd.f32 %v1671, %v1879
        %v1881 = vpop.f32.mrf.mxu0
        %v1882 = vand.u32 %v195, 4294901760
        %1883 = vmatprep.mubr.f32.mxu0 %v1882
        %v1884 = vand.u32 %v194, 4294901760
        %1885 = vmatmul.mubr.f32.gmra.mxu0 %v1884
        %v1886 = vpop.f32.mrf.mxu0
        %v1887 = vadd.f32 %v1678, %v1886
        %v1888 = vpop.f32.mrf.mxu0
        %v1889 = vand.u32 %v197, 4294901760
        %1890 = vmatprep.mubr.f32.mxu0 %v1889
        %v1891 = vand.u32 %v196, 4294901760
        %1892 = vmatmul.mubr.f32.gmra.mxu0 %v1891
        %v1893 = vpop.f32.mrf.mxu0
        %v1894 = vadd.f32 %v1685, %v1893
        %v1895 = vpop.f32.mrf.mxu0
        %v1896 = vand.u32 %v199, 4294901760
        %1897 = vmatprep.mubr.f32.mxu0 %v1896
        %v1898 = vand.u32 %v198, 4294901760
        %1899 = vmatmul.mubr.f32.gmra.mxu0 %v1898
        %v1900 = vpop.f32.mrf.mxu0
        %v1901 = vadd.f32 %v1692, %v1900
        %v1902 = vpop.f32.mrf.mxu0
        %v1903 = vand.u32 %v201, 4294901760
        %1904 = vmatprep.mubr.f32.mxu0 %v1903
        %v1905 = vand.u32 %v200, 4294901760
        %1906 = vmatmul.mubr.f32.gmra.mxu0 %v1905
        %v1907 = vpop.f32.mrf.mxu0
        %v1908 = vadd.f32 %v1699, %v1907
        %v1909 = vpop.f32.mrf.mxu0
        %v1910 = vand.u32 %v203, 4294901760
        %1911 = vmatprep.mubr.f32.mxu0 %v1910
        %v1912 = vand.u32 %v202, 4294901760
        %1913 = vmatmul.mubr.f32.gmra.mxu0 %v1912
        %v1914 = vpop.f32.mrf.mxu0
        %v1915 = vadd.f32 %v1706, %v1914
        %v1916 = vpop.f32.mrf.mxu0
        %v1917 = vand.u32 %v205, 4294901760
        %1918 = vmatprep.mubr.f32.mxu0 %v1917
        %v1919 = vand.u32 %v204, 4294901760
        %1920 = vmatmul.mubr.f32.gmra.mxu0 %v1919
        %v1921 = vpop.f32.mrf.mxu0
        %v1922 = vadd.f32 %v1713, %v1921
        %v1923 = vpop.f32.mrf.mxu0
        %v1924 = vand.u32 %v207, 4294901760
        %1925 = vmatprep.mubr.f32.mxu0 %v1924
        %v1926 = vand.u32 %v206, 4294901760
        %1927 = vmatmul.mubr.f32.gmra.mxu0 %v1926
        %v1928 = vpop.f32.mrf.mxu0
        %v1929 = vadd.f32 %v1720, %v1928
        %v1930 = vpop.f32.mrf.mxu0
        %v1931 = vand.u32 %v209, 4294901760
        %1932 = vmatprep.mubr.f32.mxu0 %v1931
        %v1933 = vand.u32 %v208, 4294901760
        %1934 = vmatmul.mubr.f32.gmra.mxu0 %v1933
        %v1935 = vpop.f32.mrf.mxu0
        %v1936 = vadd.f32 %v1727, %v1935
        %v1937 = vpop.f32.mrf.mxu0
        %v1938 = vand.u32 %v211, 4294901760
        %1939 = vmatprep.mubr.f32.mxu0 %v1938
        %v1940 = vand.u32 %v210, 4294901760
        %1941 = vmatmul.mubr.f32.gmra.mxu0 %v1940
        %v1942 = vpop.f32.mrf.mxu0
        %v1943 = vadd.f32 %v1734, %v1942
        %v1944 = vpop.f32.mrf.mxu0
        %1945 = vdwg.mxu0
        %1946 = vst [vmem:[%s177] sm:$0xff] %v1838
        %1947 = vst [vmem:[%s177 + $0x8] sm:$0xff] %v1845
        %1948 = vst [vmem:[%s177 + $0x10] sm:$0xff] %v1852
        %1949 = vst [vmem:[%s177 + $0x18] sm:$0xff] %v1859
        %1950 = vst [vmem:[%s177 + $0x20] sm:$0xff] %v1866
        %1951 = vst [vmem:[%s177 + $0x28] sm:$0xff] %v1873
        %1952 = vst [vmem:[%s177 + $0x30] sm:$0xff] %v1880
        %1953 = vst [vmem:[%s177 + $0x38] sm:$0xff] %v1887
        %1954 = vst [vmem:[%s177 + $0x40] sm:$0xff] %v1894
        %1955 = vst [vmem:[%s177 + $0x48] sm:$0xff] %v1901
        %1956 = vst [vmem:[%s177 + $0x50] sm:$0xff] %v1908
        %1957 = vst [vmem:[%s177 + $0x58] sm:$0xff] %v1915
        %1958 = vst [vmem:[%s177 + $0x60] sm:$0xff] %v1922
        %1959 = vst [vmem:[%s177 + $0x68] sm:$0xff] %v1929
        %1960 = vst [vmem:[%s177 + $0x70] sm:$0xff] %v1936
        %1961 = vst [vmem:[%s177 + $0x78] sm:$0xff] %v1943
        %s1962 = sand.u32 %s75, 1
        %s1963 = scalar_lea.sflag [#allocation4], %s1962
        %s1964 = sand.u32 %s75, 1
        %s1965 = smul.addr %s1964, 128
        %s1966 = scalar_lea.vmem [#allocation7], %s1965
        // Predicated region
        $region37: #{tpu_custom_call.1} parent=27 // pred_check
          %p1967 = pneg %p85
        $region38: #{tpu_custom_call.1} parent=27 // pred_check_branch
          %1969 = sbr.rel (%p1967) target = $region40
        $region39: #{tpu_custom_call.1} parent=27 // pred_region
          %s1970 = smul.u32 16, %s20
          %s1972 = ssub.s32 2048, 2048
          %1973 = vsyncadd %s1963, %s1972
          %s1974 = smul.addr %s1970, 128
          %s1975 = scalar_lea.hbm %s2, %s1974
          %s1976 = sshll.u32 %s1966, 4
          %s1977 = int_to_ptr.vmem [resolvable:$true] %s1976
          %1982 = dma.vmem_to_hbm [thread:$0]  %s1977, 2048, %s1975, %s1963, 128, 128, 8
        $region40: #{tpu_custom_call.1} parent=27 // pred_fallthru
          _
      $region28: #{tpu_custom_call.1} parent=5 // pred_fallthru
        _
      %p1983 = scmp.le.s32.totalorder 2, %s15
      // Predicated region
      $region41: #{tpu_custom_call.1} parent=5 // pred_check
        %p1984 = pneg %p1983
      $region42: #{tpu_custom_call.1} parent=5 // pred_check_branch
        %1986 = sbr.rel (%p1984) target = $region44
      $region43: #{tpu_custom_call.1} parent=5 // pred_region
        %s1987 = ssub.s32 %s15, 2
        // Predicated region
        $region45: #{tpu_custom_call.1} parent=43 // pred_check
          %p1988 = pneg %p91
        $region46: #{tpu_custom_call.1} parent=43 // pred_check_branch
          %1990 = sbr.rel (%p1988) target = $region48
        $region47: #{tpu_custom_call.1} parent=43 // pred_region
          %s1991 = sand.u32 %s76, 1
          %s1992 = scalar_lea.sflag [#allocation4], %s1991
          %s1993 = sand.u32 %s76, 1
          %s1994 = smul.addr %s1993, 128
          %s1995 = scalar_lea.vmem [#allocation7], %s1994
          %1996 = dma.done %s1992, 2048
        $region48: #{tpu_custom_call.1} parent=43 // pred_fallthru
          _
      $region44: #{tpu_custom_call.1} parent=5 // pred_fallthru
        _
    $region6: #{tpu_custom_call.1} parent=1 // loop_footer
      %s19 = sadd.s32 1, %s15
    $region7: #{tpu_custom_call.1} parent=1 // loop_footer_branch
      %14 = sbr.rel target = $region3
    $region8: #{tpu_custom_call.1} parent=1 // loop_exit
      _
    %1997 = vsyncpa [#allocation3], 1
    %s1998 = scalar_lea.sflag [#allocation3], 1
    %1999 = vsyncpa %s1998, 1
    %2000 = vsyncpa [#allocation6], 1
    %2001 = vsyncpa [#allocation4], 1
    %s2002 = scalar_lea.sflag [#allocation4], 1
    %2003 = vsyncpa %s2002, 1

</llo_original>
